<compile_context>
chip_gen: v6e
topology: v6e:2x2x1
jax: 0.10.0
libtpu: 0.0.40
codegen_flags: <defaults>
</compile_context>

<pallas_src>
import jax
import jax.numpy as jnp
from jax import lax
from jax.experimental import pallas as pl
from jax.experimental.pallas import tpu as pltpu


def _round_up(a: int, b: int) -> int:
    return (a + b - 1) // b * b


def _vmem_cap_bytes() -> int:
    """~85% of the physical per-core VMEM; conservative 64 MiB fallback."""
    phys = 64 * 1024 * 1024
    try:
        info = pltpu.get_tpu_info()
        phys = int(getattr(info, "vmem_capacity_bytes", 0) or phys)
    except Exception:
        pass
    return int(phys * 0.85)


def _pick_inter_tile(I: int, inter_tile: int) -> int:
    """Largest 256- (then 128-) multiple divisor of I that is <= inter_tile."""
    cap = min(inter_tile, I)
    for align in (256, 128):
        t = (cap // align) * align
        while t >= align:
            if I % t == 0:
                return t
            t -= align
    # TODO(synk): pad I instead of falling back when I is large and unaligned.
    return I


def _pick_token_tile(token_tile: int, A: int, H: int, tI: int,
                     a_sz: int, w_sz: int, cap: int) -> int:
    """Largest multiple of 128 <= token_tile whose VMEM footprint fits `cap`."""
    def est(tT):
        return (2 * tT * H * a_sz        # x tile (double buffered)
                + 2 * 2 * H * tI * w_sz  # gate + up weight tiles
                + 2 * tI * H * w_sz      # down weight tile
                + 2 * tT * 4             # routing column
                + 2 * tT * H * a_sz      # output tile
                + tT * H * 4)            # f32 accumulator
    tT = max(128, token_tile // 128 * 128)
    tT = min(tT, max(128, _round_up(A, 128)))   # don't over-pad tiny batches
    while tT > 128 and est(tT) > cap:
        tT -= 128
    return tT


def _moe_gmm_kernel(be_ref,    # SMEM prefetch: (n_blocks,) int32 expert id per row block
                    bv_ref,    # SMEM prefetch: (n_blocks,) int32 1 if block has real rows
                    x_ref,     # (tT, H)  grouped activations for this row block
                    wg_ref,    # (H, tI)  gate weights of this block's expert
                    wu_ref,    # (H, tI)  up weights
                    wd_ref,    # (tI, H)  down weights
                    rw_ref,    # (tT, 1)  f32 routing weight per row (0 for padding rows)
                    o_ref,     # (tT, H)  output tile
                    acc_ref):  # VMEM scratch (tT, H) f32 accumulator
    b = pl.program_id(0)
    it = pl.program_id(1)
    n_it = pl.num_programs(1)

    @pl.when(it == 0)
    def _init():
        acc_ref[...] = jnp.zeros_like(acc_ref)

    # Dummy (trailing) blocks only: skip all compute, output stays zero.
    @pl.when(bv_ref[b] > 0)
    def _compute():
        x = x_ref[...]
        gate = jnp.dot(x, wg_ref[...], preferred_element_type=jnp.float32)
        up = jnp.dot(x, wu_ref[...], preferred_element_type=jnp.float32)
        # Fold the per-row routing weight into h (tT x tI) before the down
        # matmul — mathematically identical, cheaper than scaling (tT, H).
        h = (gate * jax.nn.sigmoid(gate)) * up * rw_ref[...]
        acc_ref[...] += jnp.dot(h.astype(x.dtype), wd_ref[...],
                                preferred_element_type=jnp.float32)

    @pl.when(it == n_it - 1)
    def _finalize():
        o_ref[...] = acc_ref[...].astype(o_ref.dtype)


def unquantized_sparse_moe(x, gating_output, gate_up_proj, down_proj, topk,
                           *, token_tile=512, inter_tile=512,
                           weight_buffer_count=None):
    """Mirrors UnquantizedSparseMoELayer.forward (softmax scoring, renormalized topk)."""
    T, H = x.shape
    E, two_I, H2 = gate_up_proj.shape
    assert H2 == H and two_I % 2 == 0
    I = two_I // 2
    assert down_proj.shape == (E, H, I)

    # ---- routing glue (matches the torch forward) -------------------------
    routing = jax.nn.softmax(gating_output.astype(jnp.float32), axis=1)
    top_w, top_idx = lax.top_k(routing, topk)                   # (T, topk)
    top_w = top_w / jnp.sum(top_w, axis=-1, keepdims=True)      # renormalize
    top_w = top_w.astype(x.dtype)                               # torch: .to(x.dtype)

    A = T * topk
    flat_e = top_idx.reshape(-1).astype(jnp.int32)              # (A,)
    flat_t = jnp.repeat(jnp.arange(T, dtype=jnp.int32), topk)   # (A,)
    flat_w = top_w.reshape(-1).astype(jnp.float32)              # (A,)

    order = jnp.argsort(flat_e, stable=True)
    sort_e = flat_e[order]
    sort_t = flat_t[order]
    sort_w = flat_w[order]
    counts = jnp.bincount(flat_e, length=E).astype(jnp.int32)   # membership-based

    # ---- tile choices ------------------------------------------------------
    a_sz = jnp.dtype(x.dtype).itemsize
    w_sz = jnp.dtype(gate_up_proj.dtype).itemsize
    tI = _pick_inter_tile(I, inter_tile)
    n_it = I // tI if I % tI == 0 else 1
    vmem_cap = _vmem_cap_bytes()
    tT = _pick_token_tile(token_tile, A, H, tI, a_sz, w_sz, vmem_cap)

    # Static upper bound on the number of (expert-grouped, tT-padded) row blocks.
    n_blocks = max(1, min(A, pl.cdiv(A, tT) + E))
    n_rows = n_blocks * tT

    # ---- build the expert-grouped, block-padded token layout --------------
    group_start = jnp.concatenate(
        [jnp.zeros((1,), jnp.int32), jnp.cumsum(counts)[:-1].astype(jnp.int32)])
    padded_counts = ((counts + tT - 1) // tT) * tT
    padded_start = jnp.concatenate(
        [jnp.zeros((1,), jnp.int32), jnp.cumsum(padded_counts)[:-1].astype(jnp.int32)])

    rank = jnp.arange(A, dtype=jnp.int32) - group_start[sort_e]
    dest = padded_start[sort_e] + rank                         # unique slots < n_rows

    tok_pad = jnp.zeros((n_rows,), jnp.int32).at[dest].set(sort_t)
    rw_pad = jnp.zeros((n_rows,), jnp.float32).at[dest].set(sort_w)

    x_sorted = x[tok_pad]                                       # (n_rows, H) gather
    rw_sorted = rw_pad[:, None]                                 # (n_rows, 1) f32

    # per-row-block expert id / validity (dummy blocks are only at the tail)
    blk = jnp.arange(n_blocks, dtype=jnp.int32)
    blk_start = padded_start // tT
    blk_end = blk_start + padded_counts // tT
    in_e = (blk[None, :] >= blk_start[:, None]) & (blk[None, :] < blk_end[:, None])
    block_valid = jnp.any(in_e, axis=0).astype(jnp.int32)
    block_expert = jnp.sum(in_e * jnp.arange(E, dtype=jnp.int32)[:, None],
                           axis=0).astype(jnp.int32)
    last_real = jnp.max(jnp.where(counts > 0, jnp.arange(E, dtype=jnp.int32), 0))
    block_expert = jnp.where(block_valid > 0, block_expert, last_real)

    # ---- one-time weight repack (contraction dim second-to-last of RHS) ----
    w_gate = jnp.transpose(gate_up_proj[:, :I, :], (0, 2, 1))   # (E, H, I)
    w_up = jnp.transpose(gate_up_proj[:, I:, :], (0, 2, 1))     # (E, H, I)
    w_down = jnp.transpose(down_proj, (0, 2, 1))                # (E, I, H)

    # ---- BlockSpecs --------------------------------------------------------
    def _w_spec(block_shape, index_map):
        if weight_buffer_count is None:
            return pl.BlockSpec(block_shape, index_map)
        return pl.BlockSpec(block_shape, index_map,
                            pipeline_mode=pl.Buffered(weight_buffer_count))

    # For dummy tail blocks clamp the inter-tile index to 0 so they never
    # trigger fresh weight DMAs beyond a single tile.
    def gate_map(b, it, be, bv):
        return (be[b], 0, jnp.where(bv[b] > 0, it, 0))

    def up_map(b, it, be, bv):
        return (be[b], 0, jnp.where(bv[b] > 0, it, 0))

    def down_map(b, it, be, bv):
        return (be[b], jnp.where(bv[b] > 0, it, 0), 0)

    in_specs = [
        pl.BlockSpec((tT, H), lambda b, it, be, bv: (b, 0)),            # x (resident per block)
        _w_spec((pl.Squeezed(), H, tI), gate_map),                      # gate weights
        _w_spec((pl.Squeezed(), H, tI), up_map),                        # up weights
        _w_spec((pl.Squeezed(), tI, H), down_map),                      # down weights
        pl.BlockSpec((tT, 1), lambda b, it, be, bv: (b, 0)),            # routing column
    ]
    out_spec = pl.BlockSpec((tT, H), lambda b, it, be, bv: (b, 0))

    out_sorted = pl.pallas_call(
        _moe_gmm_kernel,
        out_shape=jax.ShapeDtypeStruct((n_rows, H), x.dtype),
        grid_spec=pltpu.PrefetchScalarGridSpec(
            num_scalar_prefetch=2,
            grid=(n_blocks, n_it),
            in_specs=in_specs,
            out_specs=out_spec,
            scratch_shapes=[pltpu.VMEM((tT, H), jnp.float32)],
        ),
        compiler_params=pltpu.CompilerParams(
            dimension_semantics=("parallel", "arbitrary"),
            vmem_limit_bytes=vmem_cap,
        ),
    )(block_expert, block_valid, x_sorted, w_gate, w_up, w_down, rw_sorted)

    # Combine the topk per-assignment partials back to token order (f32 add).
    # Padding / dummy rows carry rw = 0 so they contribute exact zeros.
    out = jnp.zeros((T, H), jnp.float32).at[tok_pad].add(
        out_sorted.astype(jnp.float32))
    return out.astype(x.dtype).reshape(-1, H)


def _reference_moe(x, gating_output, gate_up_proj, down_proj, topk):
    """Pure-JAX reference of the same forward."""
    T, H = x.shape
    E, two_I, _ = gate_up_proj.shape
    I = two_I // 2
    routing = jax.nn.softmax(gating_output.astype(jnp.float32), axis=1)
    top_w, top_idx = lax.top_k(routing, topk)
    top_w = top_w / jnp.sum(top_w, axis=-1, keepdims=True)
    top_w = top_w.astype(x.dtype)

    out = jnp.zeros((T, H), jnp.float32)
    for e in range(E):
        gu = jnp.dot(x, gate_up_proj[e].T, preferred_element_type=jnp.float32)
        gate, up = gu[:, :I], gu[:, I:]
        sel = jnp.sum(jnp.where(top_idx == e, top_w.astype(jnp.float32), 0.0),
                      axis=-1, keepdims=True)
        h = ((gate * jax.nn.sigmoid(gate)) * up * sel).astype(x.dtype)
        out = out + jnp.dot(h, down_proj[e].T, preferred_element_type=jnp.float32)
    return out.astype(x.dtype)


if __name__ == "__main__":
    # Small shapes that still exercise: multiple expert row blocks, dummy tail
    # blocks, and 2 intermediate tiles.  bf16 activations + weights (feedback).
    T = 256      # num tokens
    H = 256      # hidden size
    I = 512      # intermediate size
    E = 8        # num experts
    TOPK = 2

    key = jax.random.PRNGKey(0)
    kx, kg, kw1, kw2 = jax.random.split(key, 4)

    x = jax.random.normal(kx, (T, H), dtype=jnp.float32).astype(jnp.bfloat16)
    gating_output = jax.random.normal(kg, (T, E), dtype=jnp.float32)
    # PyTorch Linear weight layout: (E, 2I, H) fused [gate; up], (E, H, I) down.
    gate_up_proj = (jax.random.normal(kw1, (E, 2 * I, H), dtype=jnp.float32)
                    * 0.05).astype(jnp.bfloat16)
    down_proj = (jax.random.normal(kw2, (E, H, I), dtype=jnp.float32)
                 * 0.05).astype(jnp.bfloat16)

    out = unquantized_sparse_moe(
        x, gating_output, gate_up_proj, down_proj, TOPK,
        token_tile=128, inter_tile=256,
    )
    out = jax.block_until_ready(out)

    ref = _reference_moe(x, gating_output, gate_up_proj, down_proj, TOPK)
    assert out.shape == (T, H)
    assert jnp.allclose(out.astype(jnp.float32), ref.astype(jnp.float32),
                        atol=3e-2, rtol=3e-2), "mismatch vs reference"

    print("KERNEL_OK")
</pallas_src>

<mosaic_0001>
module attributes {stable_mosaic.version = 11 : i64} {
  func.func @_moe_gmm_kernel(%arg0: i32, %arg1: i32, %arg2: memref<12xi32, #tpu.memory_space<smem>>, %arg3: memref<12xi32, #tpu.memory_space<smem>>, %arg4: memref<128x256xbf16, #tpu.memory_space<vmem>>, %arg5: memref<1x256x256xbf16, #tpu.memory_space<vmem>>, %arg6: memref<1x256x256xbf16, #tpu.memory_space<vmem>>, %arg7: memref<1x256x256xbf16, #tpu.memory_space<vmem>>, %arg8: memref<128x1xf32, #tpu.memory_space<vmem>>, %arg9: memref<128x256xbf16, #tpu.memory_space<vmem>>, %arg10: memref<128x256xf32, #tpu.memory_space<vmem>>) attributes {dimension_semantics = [#tpu.dimension_semantics<parallel>, #tpu.dimension_semantics<arbitrary>], iteration_bounds = array<i64: 12, 2>, scalar_prefetch = 2 : i64, scratch_operands = 1 : i64, tpu.core_type = #tpu.core_type<tc>, window_params = [{transform_indices = @transform_0, window_bounds = array<i64: 128, 256>}, {transform_indices = @transform_1, window_bounds = array<i64: 1, 256, 256>}, {transform_indices = @transform_2, window_bounds = array<i64: 1, 256, 256>}, {transform_indices = @transform_3, window_bounds = array<i64: 1, 256, 256>}, {transform_indices = @transform_4, window_bounds = array<i64: 128, 1>}, {transform_indices = @transform_5, window_bounds = array<i64: 128, 256>}]} {
    %c0_i32 = arith.constant 0 : i32
    %0 = arith.cmpi eq, %arg1, %c0_i32 : i32
    %1 = arith.extui %0 : i1 to i32
    %c0_i32_0 = arith.constant 0 : i32
    %2 = arith.cmpi ne, %1, %c0_i32_0 : i32
    scf.if %2 {
      %cst = arith.constant 0.000000e+00 : f32
      %11 = vector.broadcast %cst : f32 to vector<128x256xf32>
      %c0 = arith.constant 0 : index
      %c0_4 = arith.constant 0 : index
      %12 = vector.load %arg10[%c0, %c0_4] : memref<128x256xf32, #tpu.memory_space<vmem>>, vector<128x256xf32>
      tpu.vector_store %arg10[%c0, %c0_4], %11 {strides = array<i32>} : memref<128x256xf32, #tpu.memory_space<vmem>>, vector<128x256xf32>,
    } else {
    }
    %3 = arith.index_cast %arg0 : i32 to index
    %4 = memref.load %arg3[%3] : memref<12xi32, #tpu.memory_space<smem>>
    %c0_i32_1 = arith.constant 0 : i32
    %5 = arith.cmpi sgt, %4, %c0_i32_1 : i32
    %6 = arith.extui %5 : i1 to i32
    %c0_i32_2 = arith.constant 0 : i32
    %7 = arith.cmpi ne, %6, %c0_i32_2 : i32
    scf.if %7 {
      %c0 = arith.constant 0 : index
      %c0_4 = arith.constant 0 : index
      %11 = vector.load %arg4[%c0, %c0_4] : memref<128x256xbf16, #tpu.memory_space<vmem>>, vector<128x256xbf16>
      %c0_5 = arith.constant 0 : index
      %c0_6 = arith.constant 0 : index
      %c0_7 = arith.constant 0 : index
      %12 = vector.load %arg5[%c0_5, %c0_6, %c0_7] : memref<1x256x256xbf16, #tpu.memory_space<vmem>>, vector<1x256x256xbf16>
      %13 = vector.shape_cast %12 : vector<1x256x256xbf16> to vector<256x256xbf16>
      %cst = arith.constant dense<0.000000e+00> : vector<128x256xf32>
      %14 = tpu.matmul %11, %13, %cst {dimension_numbers = #tpu.dot_dimension_numbers<[1], [0], [0], [1], [0, 0, 1, 1], [], []>} : vector<128x256xbf16>, vector<256x256xbf16>, vector<128x256xf32> -> vector<128x256xf32>
      %c0_8 = arith.constant 0 : index
      %c0_9 = arith.constant 0 : index
      %c0_10 = arith.constant 0 : index
      %15 = vector.load %arg6[%c0_8, %c0_9, %c0_10] : memref<1x256x256xbf16, #tpu.memory_space<vmem>>, vector<1x256x256xbf16>
      %16 = vector.shape_cast %15 : vector<1x256x256xbf16> to vector<256x256xbf16>
      %cst_11 = arith.constant dense<0.000000e+00> : vector<128x256xf32>
      %17 = tpu.matmul %11, %16, %cst_11 {dimension_numbers = #tpu.dot_dimension_numbers<[1], [0], [0], [1], [0, 0, 1, 1], [], []>} : vector<128x256xbf16>, vector<256x256xbf16>, vector<128x256xf32> -> vector<128x256xf32>
      %18 = arith.negf %14 : vector<128x256xf32>
      %19 = math.exp %18 : vector<128x256xf32>
      %cst_12 = arith.constant 1.000000e+00 : f32
      %20 = vector.broadcast %cst_12 : f32 to vector<128x256xf32>
      %21 = arith.addf %20, %19 : vector<128x256xf32>
      %22 = arith.divf %20, %21 : vector<128x256xf32>
      %23 = arith.mulf %14, %22 : vector<128x256xf32>
      %24 = arith.mulf %23, %17 : vector<128x256xf32>
      %c0_13 = arith.constant 0 : index
      %c0_14 = arith.constant 0 : index
      %25 = vector.load %arg8[%c0_13, %c0_14] : memref<128x1xf32, #tpu.memory_space<vmem>>, vector<128x1xf32>
      %26 = vector.broadcast %25 : vector<128x1xf32> to vector<128x256xf32>
      %27 = arith.mulf %24, %26 : vector<128x256xf32>
      %c0_15 = arith.constant 0 : index
      %c0_16 = arith.constant 0 : index
      %28 = vector.load %arg10[%c0_15, %c0_16] : memref<128x256xf32, #tpu.memory_space<vmem>>, vector<128x256xf32>
      %29 = arith.truncf %27 : vector<128x256xf32> to vector<128x256xbf16>
      %c0_17 = arith.constant 0 : index
      %c0_18 = arith.constant 0 : index
      %c0_19 = arith.constant 0 : index
      %30 = vector.load %arg7[%c0_17, %c0_18, %c0_19] : memref<1x256x256xbf16, #tpu.memory_space<vmem>>, vector<1x256x256xbf16>
      %31 = vector.shape_cast %30 : vector<1x256x256xbf16> to vector<256x256xbf16>
      %cst_20 = arith.constant dense<0.000000e+00> : vector<128x256xf32>
      %32 = tpu.matmul %29, %31, %cst_20 {dimension_numbers = #tpu.dot_dimension_numbers<[1], [0], [0], [1], [0, 0, 1, 1], [], []>} : vector<128x256xbf16>, vector<256x256xbf16>, vector<128x256xf32> -> vector<128x256xf32>
      %33 = arith.addf %28, %32 : vector<128x256xf32>
      %c0_21 = arith.constant 0 : index
      %c0_22 = arith.constant 0 : index
      %34 = vector.load %arg10[%c0_21, %c0_22] : memref<128x256xf32, #tpu.memory_space<vmem>>, vector<128x256xf32>
      tpu.vector_store %arg10[%c0_21, %c0_22], %33 {strides = array<i32>} : memref<128x256xf32, #tpu.memory_space<vmem>>, vector<128x256xf32>,
    } else {
    }
    %c1_i32 = arith.constant 1 : i32
    %8 = arith.cmpi eq, %arg1, %c1_i32 : i32
    %9 = arith.extui %8 : i1 to i32
    %c0_i32_3 = arith.constant 0 : i32
    %10 = arith.cmpi ne, %9, %c0_i32_3 : i32
    scf.if %10 {
      %c0 = arith.constant 0 : index
      %c0_4 = arith.constant 0 : index
      %11 = vector.load %arg10[%c0, %c0_4] : memref<128x256xf32, #tpu.memory_space<vmem>>, vector<128x256xf32>
      %12 = arith.truncf %11 : vector<128x256xf32> to vector<128x256xbf16>
      %c0_5 = arith.constant 0 : index
      %c0_6 = arith.constant 0 : index
      %13 = vector.load %arg9[%c0_5, %c0_6] : memref<128x256xbf16, #tpu.memory_space<vmem>>, vector<128x256xbf16>
      tpu.vector_store %arg9[%c0_5, %c0_6], %12 {strides = array<i32>} : memref<128x256xbf16, #tpu.memory_space<vmem>>, vector<128x256xbf16>,
    } else {
    }
    return
  }
  func.func @transform_0(%arg0: i32, %arg1: i32, %arg2: memref<12xi32, #tpu.memory_space<smem>>, %arg3: memref<12xi32, #tpu.memory_space<smem>>) -> (i32, i32) {
    %c0_i32 = arith.constant 0 : i32
    %c0_i32_0 = arith.constant 0 : i32
    return %arg0, %c0_i32 : i32, i32
  }
  func.func @transform_1(%arg0: i32, %arg1: i32, %arg2: memref<12xi32, #tpu.memory_space<smem>>, %arg3: memref<12xi32, #tpu.memory_space<smem>>) -> (i32, i32, i32) {
    %0 = arith.index_cast %arg0 : i32 to index
    %1 = memref.load %arg2[%0] : memref<12xi32, #tpu.memory_space<smem>>
    %2 = arith.index_cast %arg0 : i32 to index
    %3 = memref.load %arg3[%2] : memref<12xi32, #tpu.memory_space<smem>>
    %c0_i32 = arith.constant 0 : i32
    %4 = arith.cmpi sgt, %3, %c0_i32 : i32
    %c0_i32_0 = arith.constant 0 : i32
    %5 = arith.select %4, %arg1, %c0_i32_0 : i32
    %c0_i32_1 = arith.constant 0 : i32
    %c0_i32_2 = arith.constant 0 : i32
    return %1, %c0_i32_1, %5 : i32, i32, i32
  }
  func.func @transform_2(%arg0: i32, %arg1: i32, %arg2: memref<12xi32, #tpu.memory_space<smem>>, %arg3: memref<12xi32, #tpu.memory_space<smem>>) -> (i32, i32, i32) {
    %0 = arith.index_cast %arg0 : i32 to index
    %1 = memref.load %arg2[%0] : memref<12xi32, #tpu.memory_space<smem>>
    %2 = arith.index_cast %arg0 : i32 to index
    %3 = memref.load %arg3[%2] : memref<12xi32, #tpu.memory_space<smem>>
    %c0_i32 = arith.constant 0 : i32
    %4 = arith.cmpi sgt, %3, %c0_i32 : i32
    %c0_i32_0 = arith.constant 0 : i32
    %5 = arith.select %4, %arg1, %c0_i32_0 : i32
    %c0_i32_1 = arith.constant 0 : i32
    %c0_i32_2 = arith.constant 0 : i32
    return %1, %c0_i32_1, %5 : i32, i32, i32
  }
  func.func @transform_3(%arg0: i32, %arg1: i32, %arg2: memref<12xi32, #tpu.memory_space<smem>>, %arg3: memref<12xi32, #tpu.memory_space<smem>>) -> (i32, i32, i32) {
    %0 = arith.index_cast %arg0 : i32 to index
    %1 = memref.load %arg2[%0] : memref<12xi32, #tpu.memory_space<smem>>
    %2 = arith.index_cast %arg0 : i32 to index
    %3 = memref.load %arg3[%2] : memref<12xi32, #tpu.memory_space<smem>>
    %c0_i32 = arith.constant 0 : i32
    %4 = arith.cmpi sgt, %3, %c0_i32 : i32
    %c0_i32_0 = arith.constant 0 : i32
    %5 = arith.select %4, %arg1, %c0_i32_0 : i32
    %c0_i32_1 = arith.constant 0 : i32
    %c0_i32_2 = arith.constant 0 : i32
    return %1, %5, %c0_i32_1 : i32, i32, i32
  }
  func.func @transform_4(%arg0: i32, %arg1: i32, %arg2: memref<12xi32, #tpu.memory_space<smem>>, %arg3: memref<12xi32, #tpu.memory_space<smem>>) -> (i32, i32) {
    %c0_i32 = arith.constant 0 : i32
    %c0_i32_0 = arith.constant 0 : i32
    return %arg0, %c0_i32 : i32, i32
  }
  func.func @transform_5(%arg0: i32, %arg1: i32, %arg2: memref<12xi32, #tpu.memory_space<smem>>, %arg3: memref<12xi32, #tpu.memory_space<smem>>) -> (i32, i32) {
    %c0_i32 = arith.constant 0 : i32
    %c0_i32_0 = arith.constant 0 : i32
    return %arg0, %c0_i32 : i32, i32
  }
}

</mosaic_0001>

<llo_original>
// kernel: tpu_custom_call.1
$region0: #{tpu_custom_call.1}
  #allocation0 [shape = 'u32[]', space=smem, size = 0x4, offset = 0x4, fixed_abs, tag = 'smem constant byte address 0x4 - core index']
  #allocation1 [shape = 'u32[144,128]{1,0:T(1,128)}', space=vmem, size = 0x12000, scoped, tag = 'internal scratch']
  #allocation2 [shape = 'f32[128,256]{1,0:T(8,128)}', space=vmem, size = 0x20000, scoped, tag = 'scratch operand']
  #allocation3 [shape = 's32[1]{0}', space=sflag, size = 0x4, scoped, tag = 'scoped memory for tpu_custom_call.1']
  #allocation4 [shape = 'u8[512]{0}', space=smem, size = 0x200, scoped, tag = 'prefetched SMEM operand 0']
  #allocation5 [shape = 'u8[512]{0}', space=smem, size = 0x200, scoped, tag = 'prefetched SMEM operand 1']
  %s0 = inlined_call_operand.hbm [shape: s32[12], index: 0, kind: input, shape index: {}]
  %s1 = inlined_call_operand.hbm [shape: s32[12], index: 1, kind: input, shape index: {}]
  %s2 = inlined_call_operand.hbm [shape: bf16[1536,256], index: 2, kind: input, shape index: {}]
  %s3 = inlined_call_operand.hbm [shape: bf16[8,256,512], index: 3, kind: input, shape index: {}]
  %s4 = inlined_call_operand.hbm [shape: bf16[8,256,512], index: 4, kind: input, shape index: {}]
  %s5 = inlined_call_operand.hbm [shape: bf16[8,512,256], index: 5, kind: input, shape index: {}]
  %s6 = inlined_call_operand.vmem [shape: f32[1536,1], index: 6, kind: input, shape index: {}]
  %s7 = inlined_call_operand.hbm [shape: bf16[1536,256], index: 7, kind: output, shape index: {}]
  %s8 = sld [smem:[#allocation0]]
  $region81: #{tpu_custom_call.1} parent=0
    _
  %s10 = ssub.s32 1, %s8
  %s11 = scalar_select 0, %s10, %s8
  %13 = dma.hbm_to_smem %s0, 16, [#allocation4], [#allocation3]
  %15 = dma.hbm_to_smem %s1, 16, [#allocation5], [#allocation3]
  %16 = dma.done [#allocation3], 32
  %17 = sfence
  $region1: #{tpu_custom_call.1} parent=0
    #allocation6 [shape = 'u8[131072]{0}', space=vmem, size = 0x20000, scoped, tag = 'input window, operand 2']
    #allocation7 [shape = 's32[2]{0}', space=sflag, size = 0x8, scoped, tag = 'scoped memory for tpu_custom_call.1']
    #allocation8 [shape = 's32[2]{0}', space=sflag, size = 0x8, scoped, tag = 'scoped memory for tpu_custom_call.1']
    #allocation9 [shape = 'u8[262144]{0}', space=vmem, size = 0x40000, scoped, tag = 'input window, operand 3']
    #allocation10 [shape = 's32[2]{0}', space=sflag, size = 0x8, scoped, tag = 'scoped memory for tpu_custom_call.1']
    #allocation11 [shape = 'u8[262144]{0}', space=vmem, size = 0x40000, scoped, tag = 'input window, operand 4']
    #allocation12 [shape = 'u8[262144]{0}', space=vmem, size = 0x40000, scoped, tag = 'input window, operand 5']
    #allocation13 [shape = 's32[2]{0}', space=sflag, size = 0x8, scoped, tag = 'scoped memory for tpu_custom_call.1']
    #allocation14 [shape = 'u8[131072]{0}', space=vmem, size = 0x20000, scoped, tag = 'output window, operand 0']
    %18 = vsyncpa [#allocation7], 0
    %s19 = scalar_lea.sflag [#allocation7], 1
    %20 = vsyncpa %s19, 0
    %21 = vsyncpa [#allocation10], 0
    %s22 = scalar_lea.sflag [#allocation10], 1
    %23 = vsyncpa %s22, 0
    %24 = vsyncpa [#allocation13], 0
    %s25 = scalar_lea.sflag [#allocation13], 1
    %26 = vsyncpa %s25, 0
    %27 = vsyncpa [#allocation8], 0
    %s28 = scalar_lea.sflag [#allocation8], 1
    %29 = vsyncpa %s28, 0
    loop: start=0, step=1, limit=26
    $region2: #{tpu_custom_call.1} parent=1 // loop_pre_header
      _
    $region3: #{tpu_custom_call.1} parent=1 // loop_header
      %s31 = sphi 0, %s35
      %p32 = scmp.ge.s32.totalorder %s31, 26
      %s38 = sphi 0, %s50
      %s39 = sphi 0, %s46
      %s40 = sphi 0, %s38
      %s41 = sphi 0, %s39
      %s42 = sphi 0, %s40
      %s43 = sphi 0, %s41
      %s53 = sphi 0, %s55
      %s56 = sphi 0, %s53
      %s57 = sphi 0, %s56
      %s73 = sphi 0, %s57
      %s89 = sphi 0, %s91
      %s92 = sphi 0, %s89
      %s93 = sphi 0, %s92
      %s109 = sphi 0, %s93
      %s125 = sphi 0, %s127
      %s128 = sphi 0, %s125
      %s129 = sphi 0, %s128
      %s145 = sphi 0, %s129
      %s161 = sphi 0, %s163
      %s164 = sphi 0, %s161
      %s165 = sphi 0, %s164
      %s181 = sphi 0, %s165
      %s187 = sphi 0, %s189
      %s190 = sphi 0, %s187
      %s191 = sphi 0, %s190
      %s207 = sphi 0, %s191
      %s213 = sphi 0, %s215
      %s216 = sphi 0, %s213
      %s217 = sphi 0, %s216
      %s233 = sphi 0, %s217
    $region4: #{tpu_custom_call.1} parent=1 // loop_header_branch
      %34 = sbr.rel (%p32) target = $region8
    $region5: #{tpu_custom_call.1} parent=1 // loop_body
      %s36 = ssub.s32 %s31, 1
      %s37 = ssub.s32 %s31, 2
      %s44 = sadd.s32 1, %s39
      %p45 = scmp.ge.s32.totalorder %s44, 2
      %s46 = scalar_select %p45, 0, %s44
      %s47 = sadd.s32 1, %s38
      %s48 = scalar_select %p45, %s47, %s38
      %p49 = scmp.ge.s32.totalorder %s48, 12
      %s50 = scalar_select %p49, 0, %s48
      %s51 = ssub.s32 %s38, %s50
      %p52 = scmp.eq.s32.totalorder %s51, 0
      %s54 = sadd.s32 %s53, 1
      %s55 = scalar_select %p52, %s53, %s54
      %p58 = pneg %p52
      %p59 = scmp.eq.s32.totalorder %s31, 23
      %p60 = por %p58, %p59
      %p61 = scmp.ne.s32.totalorder %s53, %s56
      %p62 = scmp.eq.s32.totalorder %s31, 0
      %p63 = por %p61, %p62
      %p64 = scmp.ne.s32.totalorder %s53, %s56
      %p65 = scmp.eq.s32.totalorder %s36, 23
      %p66 = por %p64, %p65
      %p67 = scmp.ne.s32.totalorder %s56, %s57
      %p68 = scmp.eq.s32.totalorder %s36, 0
      %p69 = por %p67, %p68
      %p70 = scmp.ne.s32.totalorder %s56, %s57
      %p71 = scmp.eq.s32.totalorder %s37, 23
      %p72 = por %p70, %p71
      %p74 = scmp.ne.s32.totalorder %s57, %s73
      %p75 = scmp.eq.s32.totalorder %s37, 0
      %p76 = por %p74, %p75
      %s77 = sld [smem:[#allocation4 + %s38]]
      %s78 = sld [smem:[#allocation5 + %s38]]
      %p79 = scmp.gt.s32.totalorder %s78, 0
      %s80 = scalar_select %p79, %s39, 0
      %s81 = sld [smem:[#allocation4 + %s50]]
      %s82 = sld [smem:[#allocation5 + %s50]]
      %p83 = scmp.gt.s32.totalorder %s82, 0
      %s84 = scalar_select %p83, %s46, 0
      %s85 = ssub.s32 %s77, %s81
      %s86 = ssub.s32 %s80, %s84
      %s87 = sor.u32 %s85, %s86
      %p88 = scmp.eq.s32.totalorder %s87, 0
      %s90 = sadd.s32 %s89, 1
      %s91 = scalar_select %p88, %s89, %s90
      %p94 = pneg %p88
      %p95 = scmp.eq.s32.totalorder %s31, 23
      %p96 = por %p94, %p95
      %p97 = scmp.ne.s32.totalorder %s89, %s92
      %p98 = scmp.eq.s32.totalorder %s31, 0
      %p99 = por %p97, %p98
      %p100 = scmp.ne.s32.totalorder %s89, %s92
      %p101 = scmp.eq.s32.totalorder %s36, 23
      %p102 = por %p100, %p101
      %p103 = scmp.ne.s32.totalorder %s92, %s93
      %p104 = scmp.eq.s32.totalorder %s36, 0
      %p105 = por %p103, %p104
      %p106 = scmp.ne.s32.totalorder %s92, %s93
      %p107 = scmp.eq.s32.totalorder %s37, 23
      %p108 = por %p106, %p107
      %p110 = scmp.ne.s32.totalorder %s93, %s109
      %p111 = scmp.eq.s32.totalorder %s37, 0
      %p112 = por %p110, %p111
      %s113 = sld [smem:[#allocation4 + %s38]]
      %s114 = sld [smem:[#allocation5 + %s38]]
      %p115 = scmp.gt.s32.totalorder %s114, 0
      %s116 = scalar_select %p115, %s39, 0
      %s117 = sld [smem:[#allocation4 + %s50]]
      %s118 = sld [smem:[#allocation5 + %s50]]
      %p119 = scmp.gt.s32.totalorder %s118, 0
      %s120 = scalar_select %p119, %s46, 0
      %s121 = ssub.s32 %s113, %s117
      %s122 = ssub.s32 %s116, %s120
      %s123 = sor.u32 %s121, %s122
      %p124 = scmp.eq.s32.totalorder %s123, 0
      %s126 = sadd.s32 %s125, 1
      %s127 = scalar_select %p124, %s125, %s126
      %p130 = pneg %p124
      %p131 = scmp.eq.s32.totalorder %s31, 23
      %p132 = por %p130, %p131
      %p133 = scmp.ne.s32.totalorder %s125, %s128
      %p134 = scmp.eq.s32.totalorder %s31, 0
      %p135 = por %p133, %p134
      %p136 = scmp.ne.s32.totalorder %s125, %s128
      %p137 = scmp.eq.s32.totalorder %s36, 23
      %p138 = por %p136, %p137
      %p139 = scmp.ne.s32.totalorder %s128, %s129
      %p140 = scmp.eq.s32.totalorder %s36, 0
      %p141 = por %p139, %p140
      %p142 = scmp.ne.s32.totalorder %s128, %s129
      %p143 = scmp.eq.s32.totalorder %s37, 23
      %p144 = por %p142, %p143
      %p146 = scmp.ne.s32.totalorder %s129, %s145
      %p147 = scmp.eq.s32.totalorder %s37, 0
      %p148 = por %p146, %p147
      %s149 = sld [smem:[#allocation4 + %s38]]
      %s150 = sld [smem:[#allocation5 + %s38]]
      %p151 = scmp.gt.s32.totalorder %s150, 0
      %s152 = scalar_select %p151, %s39, 0
      %s153 = sld [smem:[#allocation4 + %s50]]
      %s154 = sld [smem:[#allocation5 + %s50]]
      %p155 = scmp.gt.s32.totalorder %s154, 0
      %s156 = scalar_select %p155, %s46, 0
      %s157 = ssub.s32 %s149, %s153
      %s158 = ssub.s32 %s152, %s156
      %s159 = sor.u32 %s157, %s158
      %p160 = scmp.eq.s32.totalorder %s159, 0
      %s162 = sadd.s32 %s161, 1
      %s163 = scalar_select %p160, %s161, %s162
      %p166 = pneg %p160
      %p167 = scmp.eq.s32.totalorder %s31, 23
      %p168 = por %p166, %p167
      %p169 = scmp.ne.s32.totalorder %s161, %s164
      %p170 = scmp.eq.s32.totalorder %s31, 0
      %p171 = por %p169, %p170
      %p172 = scmp.ne.s32.totalorder %s161, %s164
      %p173 = scmp.eq.s32.totalorder %s36, 23
      %p174 = por %p172, %p173
      %p175 = scmp.ne.s32.totalorder %s164, %s165
      %p176 = scmp.eq.s32.totalorder %s36, 0
      %p177 = por %p175, %p176
      %p178 = scmp.ne.s32.totalorder %s164, %s165
      %p179 = scmp.eq.s32.totalorder %s37, 23
      %p180 = por %p178, %p179
      %p182 = scmp.ne.s32.totalorder %s165, %s181
      %p183 = scmp.eq.s32.totalorder %s37, 0
      %p184 = por %p182, %p183
      %s185 = ssub.s32 %s38, %s50
      %p186 = scmp.eq.s32.totalorder %s185, 0
      %s188 = sadd.s32 %s187, 1
      %s189 = scalar_select %p186, %s187, %s188
      %p192 = pneg %p186
      %p193 = scmp.eq.s32.totalorder %s31, 23
      %p194 = por %p192, %p193
      %p195 = scmp.ne.s32.totalorder %s187, %s190
      %p196 = scmp.eq.s32.totalorder %s31, 0
      %p197 = por %p195, %p196
      %p198 = scmp.ne.s32.totalorder %s187, %s190
      %p199 = scmp.eq.s32.totalorder %s36, 23
      %p200 = por %p198, %p199
      %p201 = scmp.ne.s32.totalorder %s190, %s191
      %p202 = scmp.eq.s32.totalorder %s36, 0
      %p203 = por %p201, %p202
      %p204 = scmp.ne.s32.totalorder %s190, %s191
      %p205 = scmp.eq.s32.totalorder %s37, 23
      %p206 = por %p204, %p205
      %p208 = scmp.ne.s32.totalorder %s191, %s207
      %p209 = scmp.eq.s32.totalorder %s37, 0
      %p210 = por %p208, %p209
      %s211 = ssub.s32 %s38, %s50
      %p212 = scmp.eq.s32.totalorder %s211, 0
      %s214 = sadd.s32 %s213, 1
      %s215 = scalar_select %p212, %s213, %s214
      %p218 = pneg %p212
      %p219 = scmp.eq.s32.totalorder %s31, 23
      %p220 = por %p218, %p219
      %p221 = scmp.ne.s32.totalorder %s213, %s216
      %p222 = scmp.eq.s32.totalorder %s31, 0
      %p223 = por %p221, %p222
      %p224 = scmp.ne.s32.totalorder %s213, %s216
      %p225 = scmp.eq.s32.totalorder %s36, 23
      %p226 = por %p224, %p225
      %p227 = scmp.ne.s32.totalorder %s216, %s217
      %p228 = scmp.eq.s32.totalorder %s36, 0
      %p229 = por %p227, %p228
      %p230 = scmp.ne.s32.totalorder %s216, %s217
      %p231 = scmp.eq.s32.totalorder %s37, 23
      %p232 = por %p230, %p231
      %p234 = scmp.ne.s32.totalorder %s217, %s233
      %p235 = scmp.eq.s32.totalorder %s37, 0
      %p236 = por %p234, %p235
      %p237 = scmp.le.s32.totalorder 1, %s31
      %p238 = scmp.lt.s32.totalorder %s31, 25
      %p239 = pnand %p237, %p238
      %p240 = pneg %p239
      // Predicated region
      $region9: #{tpu_custom_call.1} parent=5 // pred_check
        _
      $region10: #{tpu_custom_call.1} parent=5 // pred_check_branch
        %242 = sbr.rel (%p239) target = $region12
      $region11: #{tpu_custom_call.1} parent=5 // pred_region
        %s243 = ssub.s32 %s31, 1
      $region12: #{tpu_custom_call.1} parent=5 // pred_fallthru
        _
      %p244 = scmp.lt.s32.totalorder %s31, 24
      // Predicated region
      $region13: #{tpu_custom_call.1} parent=5 // pred_check
        %p245 = pneg %p244
      $region14: #{tpu_custom_call.1} parent=5 // pred_check_branch
        %247 = sbr.rel (%p245) target = $region16
      $region15: #{tpu_custom_call.1} parent=5 // pred_region
        // Predicated region
        $region17: #{tpu_custom_call.1} parent=15 // pred_check
          %p248 = pneg %p63
        $region18: #{tpu_custom_call.1} parent=15 // pred_check_branch
          %250 = sbr.rel (%p248) target = $region20
        $region19: #{tpu_custom_call.1} parent=15 // pred_region
          %s251 = sand.u32 %s53, 1
          %s252 = scalar_lea.sflag [#allocation7], %s251
          %s253 = sand.u32 %s53, 1
          %s254 = smul.addr %s253, 128
          %s255 = scalar_lea.vmem [#allocation6], %s254
          %s256 = smul.u32 16, %s38
          %s258 = ssub.s32 2048, 2048
          %259 = vsyncadd %s252, %s258
          %s260 = smul.addr %s256, 2
          %s261 = smul.addr %s260, 64
          %s262 = scalar_lea.hbm %s2, %s261
          %s263 = sshll.u32 %s255, 4
          %s264 = int_to_ptr.vmem [resolvable:$true] %s263
          %269 = dma.hbm_to_vmem [thread:$0]  %s262, 2048, %s264, %s252, 128, 128, 8
        $region20: #{tpu_custom_call.1} parent=15 // pred_fallthru
          _
        // Predicated region
        $region21: #{tpu_custom_call.1} parent=15 // pred_check
          %p270 = pneg %p99
        $region22: #{tpu_custom_call.1} parent=15 // pred_check_branch
          %272 = sbr.rel (%p270) target = $region24
        $region23: #{tpu_custom_call.1} parent=15 // pred_region
          %s273 = sand.u32 %s31, 1
          %s274 = scalar_lea.sflag [#allocation10], %s273
          %s275 = sand.u32 %s89, 1
          %s276 = smul.addr %s275, 256
          %s277 = scalar_lea.vmem [#allocation9], %s276
          %s278 = sld [smem:[#allocation4 + %s38]]
          %s279 = sld [smem:[#allocation5 + %s38]]
          %p280 = scmp.gt.s32.totalorder %s279, 0
          %s281 = scalar_select %p280, %s39, 0
          %s282 = smul.u32 2, %s281
          %s284 = ssub.s32 4096, 4096
          %285 = vsyncadd %s274, %s284
          %s286 = smul.addr %s278, 128
          %s287 = sadd.s32 %s282, %s286
          %s288 = smul.addr %s287, 64
          %s289 = scalar_lea.hbm %s3, %s288
          %s290 = sshll.u32 %s277, 4
          %s291 = int_to_ptr.vmem [resolvable:$true] %s290
          %296 = dma.hbm_to_vmem [thread:$0]  %s289, 4096, %s291, %s274, 256, 128, 8
        $region24: #{tpu_custom_call.1} parent=15 // pred_fallthru
          _
        // Predicated region
        $region25: #{tpu_custom_call.1} parent=15 // pred_check
          %p297 = pneg %p135
        $region26: #{tpu_custom_call.1} parent=15 // pred_check_branch
          %299 = sbr.rel (%p297) target = $region28
        $region27: #{tpu_custom_call.1} parent=15 // pred_region
          %s300 = sand.u32 %s31, 1
          %s301 = scalar_lea.sflag [#allocation10], %s300
          %s302 = sand.u32 %s125, 1
          %s303 = smul.addr %s302, 256
          %s304 = scalar_lea.vmem [#allocation11], %s303
          %s305 = sld [smem:[#allocation4 + %s38]]
          %s306 = sld [smem:[#allocation5 + %s38]]
          %p307 = scmp.gt.s32.totalorder %s306, 0
          %s308 = scalar_select %p307, %s39, 0
          %s309 = smul.u32 2, %s308
          %s311 = ssub.s32 4096, 4096
          %312 = vsyncadd %s301, %s311
          %s313 = smul.addr %s305, 128
          %s314 = sadd.s32 %s309, %s313
          %s315 = smul.addr %s314, 64
          %s316 = scalar_lea.hbm %s4, %s315
          %s317 = sshll.u32 %s304, 4
          %s318 = int_to_ptr.vmem [resolvable:$true] %s317
          %323 = dma.hbm_to_vmem [thread:$0]  %s316, 4096, %s318, %s301, 256, 128, 8
        $region28: #{tpu_custom_call.1} parent=15 // pred_fallthru
          _
        // Predicated region
        $region29: #{tpu_custom_call.1} parent=15 // pred_check
          %p324 = pneg %p171
        $region30: #{tpu_custom_call.1} parent=15 // pred_check_branch
          %326 = sbr.rel (%p324) target = $region32
        $region31: #{tpu_custom_call.1} parent=15 // pred_region
          %s327 = sand.u32 %s161, 1
          %s328 = scalar_lea.sflag [#allocation13], %s327
          %s329 = sand.u32 %s161, 1
          %s330 = smul.addr %s329, 256
          %s331 = scalar_lea.vmem [#allocation12], %s330
          %s332 = sld [smem:[#allocation4 + %s38]]
          %s333 = sld [smem:[#allocation5 + %s38]]
          %p334 = scmp.gt.s32.totalorder %s333, 0
          %s335 = scalar_select %p334, %s39, 0
          %s336 = smul.u32 32, %s335
          %s338 = ssub.s32 4096, 4096
          %339 = vsyncadd %s328, %s338
          %s340 = smul.addr %s336, 2
          %s341 = smul.addr %s332, 128
          %s342 = sadd.s32 %s340, %s341
          %s343 = smul.addr %s342, 64
          %s344 = scalar_lea.hbm %s5, %s343
          %s345 = sshll.u32 %s331, 4
          %s346 = int_to_ptr.vmem [resolvable:$true] %s345
          %351 = dma.hbm_to_vmem [thread:$0]  %s344, 4096, %s346, %s328, 128, 128, 8
        $region32: #{tpu_custom_call.1} parent=15 // pred_fallthru
          _
        // Predicated region
        $region33: #{tpu_custom_call.1} parent=15 // pred_check
          %p352 = pneg %p197
        $region34: #{tpu_custom_call.1} parent=15 // pred_check_branch
          %354 = sbr.rel (%p352) target = $region36
        $region35: #{tpu_custom_call.1} parent=15 // pred_region
          %s355 = smul.u32 16, %s38
          %p356 = scmp.lt.s32.totalorder %s355, 191
          %s357 = scalar_select %p356, %s355, 191
          %s358 = smul.addr %s357, 8
          %s359 = scalar_lea.vmem %s6, %s358
          %s360 = smul.u32 16, %s38
        $region36: #{tpu_custom_call.1} parent=15 // pred_fallthru
          _
      $region16: #{tpu_custom_call.1} parent=5 // pred_fallthru
        _
      %p361 = scmp.le.s32.totalorder 1, %s31
      %p362 = scmp.lt.s32.totalorder %s31, 25
      %p363 = pnand %p361, %p362
      %p364 = pneg %p363
      // Predicated region
      $region37: #{tpu_custom_call.1} parent=5 // pred_check
        _
      $region38: #{tpu_custom_call.1} parent=5 // pred_check_branch
        %366 = sbr.rel (%p363) target = $region40
      $region39: #{tpu_custom_call.1} parent=5 // pred_region
        %s367 = ssub.s32 %s31, 1
        %s368 = sand.u32 %s56, 1
        %s369 = scalar_lea.sflag [#allocation7], %s368
        %s370 = sand.u32 %s56, 1
        %s371 = smul.addr %s370, 128
        %s372 = scalar_lea.vmem [#allocation6], %s371
        // Predicated region
        $region41: #{tpu_custom_call.1} parent=39 // pred_check
          %p373 = pneg %p69
        $region42: #{tpu_custom_call.1} parent=39 // pred_check_branch
          %375 = sbr.rel (%p373) target = $region44
        $region43: #{tpu_custom_call.1} parent=39 // pred_region
          %376 = dma.done %s369, 2048
        $region44: #{tpu_custom_call.1} parent=39 // pred_fallthru
          _
        %s377 = sand.u32 %s36, 1
        %s378 = scalar_lea.sflag [#allocation10], %s377
        %s379 = sand.u32 %s92, 1
        %s380 = smul.addr %s379, 256
        %s381 = scalar_lea.vmem [#allocation9], %s380
        // Predicated region
        $region45: #{tpu_custom_call.1} parent=39 // pred_check
          %p382 = pneg %p105
        $region46: #{tpu_custom_call.1} parent=39 // pred_check_branch
          %384 = sbr.rel (%p382) target = $region48
        $region47: #{tpu_custom_call.1} parent=39 // pred_region
          %385 = dma.done %s378, 4096
        $region48: #{tpu_custom_call.1} parent=39 // pred_fallthru
          _
        %s386 = sand.u32 %s36, 1
        %s387 = scalar_lea.sflag [#allocation10], %s386
        %s388 = sand.u32 %s128, 1
        %s389 = smul.addr %s388, 256
        %s390 = scalar_lea.vmem [#allocation11], %s389
        // Predicated region
        $region49: #{tpu_custom_call.1} parent=39 // pred_check
          %p391 = pneg %p141
        $region50: #{tpu_custom_call.1} parent=39 // pred_check_branch
          %393 = sbr.rel (%p391) target = $region52
        $region51: #{tpu_custom_call.1} parent=39 // pred_region
          %394 = dma.done %s387, 4096
        $region52: #{tpu_custom_call.1} parent=39 // pred_fallthru
          _
        %s395 = sand.u32 %s164, 1
        %s396 = scalar_lea.sflag [#allocation13], %s395
        %s397 = sand.u32 %s164, 1
        %s398 = smul.addr %s397, 256
        %s399 = scalar_lea.vmem [#allocation12], %s398
        // Predicated region
        $region53: #{tpu_custom_call.1} parent=39 // pred_check
          %p400 = pneg %p177
        $region54: #{tpu_custom_call.1} parent=39 // pred_check_branch
          %402 = sbr.rel (%p400) target = $region56
        $region55: #{tpu_custom_call.1} parent=39 // pred_region
          %403 = dma.done %s396, 4096
        $region56: #{tpu_custom_call.1} parent=39 // pred_fallthru
          _
        %s404 = sand.u32 %s56, 1
        %s405 = scalar_lea.sflag [#allocation7], %s404
        %s406 = sand.u32 %s56, 1
        %s407 = smul.addr %s406, 128
        %s408 = scalar_lea.vmem [#allocation6], %s407
        %p409 = pneg %p69
        %p410 = pneg %p66
        %s411 = sand.u32 %s36, 1
        %s412 = scalar_lea.sflag [#allocation10], %s411
        %s413 = sand.u32 %s92, 1
        %s414 = smul.addr %s413, 256
        %s415 = scalar_lea.vmem [#allocation9], %s414
        %p416 = pneg %p105
        %p417 = pneg %p102
        %s418 = sand.u32 %s36, 1
        %s419 = scalar_lea.sflag [#allocation10], %s418
        %s420 = sand.u32 %s128, 1
        %s421 = smul.addr %s420, 256
        %s422 = scalar_lea.vmem [#allocation11], %s421
        %p423 = pneg %p141
        %p424 = pneg %p138
        %s425 = sand.u32 %s164, 1
        %s426 = scalar_lea.sflag [#allocation13], %s425
        %s427 = sand.u32 %s164, 1
        %s428 = smul.addr %s427, 256
        %s429 = scalar_lea.vmem [#allocation12], %s428
        %p430 = pneg %p177
        %p431 = pneg %p174
        %s432 = smul.u32 16, %s40
        %p433 = scmp.lt.s32.totalorder %s432, 191
        %s434 = scalar_select %p433, %s432, 191
        %s435 = smul.addr %s434, 8
        %s436 = scalar_lea.vmem %s6, %s435
        %p437 = pneg %p203
        %p438 = pneg %p200
        %p439 = pneg %p229
        %p440 = pneg %p226
        %s441 = sand.u32 %s216, 1
        %s442 = scalar_lea.sflag [#allocation8], %s441
        %s443 = sand.u32 %s216, 1
        %s444 = smul.addr %s443, 128
        %s445 = scalar_lea.vmem [#allocation14], %s444
        %s446 = smul.u32 16, %s40
        %s447 = sld [smem:[#allocation4 + %s40]]
        %s448 = sld [smem:[#allocation5 + %s40]]
        %p449 = scmp.gt.s32.totalorder %s448, 0
        %s450 = scalar_select %p449, %s41, 0
        %s451 = smul.u32 2, %s450
        %s452 = sld [smem:[#allocation4 + %s40]]
        %s453 = sld [smem:[#allocation5 + %s40]]
        %p454 = scmp.gt.s32.totalorder %s453, 0
        %s455 = scalar_select %p454, %s41, 0
        %s456 = smul.u32 2, %s455
        %s457 = sld [smem:[#allocation4 + %s40]]
        %s458 = sld [smem:[#allocation5 + %s40]]
        %p459 = scmp.gt.s32.totalorder %s458, 0
        %s460 = scalar_select %p459, %s41, 0
        %s461 = smul.u32 32, %s460
        %s462 = smul.u32 16, %s40
        %p463 = scmp.lt.s32.totalorder %s462, 191
        %s464 = scalar_select %p463, %s462, 191
        %s465 = smul.addr %s464, 8
        %s466 = scalar_lea.vmem %s6, %s465
        %s467 = smul.u32 16, %s40
        %s468 = smul.u32 16, %s40
        %p469 = scmp.eq.s32.totalorder %s41, 0
        // Predicated region
        $region57: #{tpu_custom_call.1} parent=39 // pred_check
          %p470 = pneg %p469
        $region58: #{tpu_custom_call.1} parent=39 // pred_check_branch
          %472 = sbr.rel (%p470) target = $region60
        $region59: #{tpu_custom_call.1} parent=39 // pred_region
          %473 = vst [vmem:[#allocation2] sm:$0xff] 0.0
          %474 = vst [vmem:[#allocation2 + $0x8] sm:$0xff] 0.0
          %475 = vst [vmem:[#allocation2 + $0x10] sm:$0xff] 0.0
          %476 = vst [vmem:[#allocation2 + $0x18] sm:$0xff] 0.0
          %477 = vst [vmem:[#allocation2 + $0x20] sm:$0xff] 0.0
          %478 = vst [vmem:[#allocation2 + $0x28] sm:$0xff] 0.0
          %479 = vst [vmem:[#allocation2 + $0x30] sm:$0xff] 0.0
          %480 = vst [vmem:[#allocation2 + $0x38] sm:$0xff] 0.0
          %481 = vst [vmem:[#allocation2 + $0x40] sm:$0xff] 0.0
          %482 = vst [vmem:[#allocation2 + $0x48] sm:$0xff] 0.0
          %483 = vst [vmem:[#allocation2 + $0x50] sm:$0xff] 0.0
          %484 = vst [vmem:[#allocation2 + $0x58] sm:$0xff] 0.0
          %485 = vst [vmem:[#allocation2 + $0x60] sm:$0xff] 0.0
          %486 = vst [vmem:[#allocation2 + $0x68] sm:$0xff] 0.0
          %487 = vst [vmem:[#allocation2 + $0x70] sm:$0xff] 0.0
          %488 = vst [vmem:[#allocation2 + $0x78] sm:$0xff] 0.0
          %489 = vst [vmem:[#allocation2 + $0x80] sm:$0xff] 0.0
          %490 = vst [vmem:[#allocation2 + $0x88] sm:$0xff] 0.0
          %491 = vst [vmem:[#allocation2 + $0x90] sm:$0xff] 0.0
          %492 = vst [vmem:[#allocation2 + $0x98] sm:$0xff] 0.0
          %493 = vst [vmem:[#allocation2 + $0xa0] sm:$0xff] 0.0
          %494 = vst [vmem:[#allocation2 + $0xa8] sm:$0xff] 0.0
          %495 = vst [vmem:[#allocation2 + $0xb0] sm:$0xff] 0.0
          %496 = vst [vmem:[#allocation2 + $0xb8] sm:$0xff] 0.0
          %497 = vst [vmem:[#allocation2 + $0xc0] sm:$0xff] 0.0
          %498 = vst [vmem:[#allocation2 + $0xc8] sm:$0xff] 0.0
          %499 = vst [vmem:[#allocation2 + $0xd0] sm:$0xff] 0.0
          %500 = vst [vmem:[#allocation2 + $0xd8] sm:$0xff] 0.0
          %501 = vst [vmem:[#allocation2 + $0xe0] sm:$0xff] 0.0
          %502 = vst [vmem:[#allocation2 + $0xe8] sm:$0xff] 0.0
          %503 = vst [vmem:[#allocation2 + $0xf0] sm:$0xff] 0.0
          %504 = vst [vmem:[#allocation2 + $0xf8] sm:$0xff] 0.0
        $region60: #{tpu_custom_call.1} parent=39 // pred_fallthru
          _
        %s505 = sld [smem:[#allocation5 + %s40]]
        %p506 = scmp.gt.s32.totalorder %s505, 0
        // Predicated region
        $region61: #{tpu_custom_call.1} parent=39 // pred_check
          %p507 = pneg %p506
        $region62: #{tpu_custom_call.1} parent=39 // pred_check_branch
          %509 = sbr.rel (%p507) target = $region64
        $region63: #{tpu_custom_call.1} parent=39 // pred_region
          %v510 = vld [vmem:[%s372] sm:$0xff]
          %v511 = vld [vmem:[%s372 + $0x8] sm:$0xff]
          %v512 = vld [vmem:[%s372 + $0x10] sm:$0xff]
          %v513 = vld [vmem:[%s372 + $0x18] sm:$0xff]
          %v514 = vld [vmem:[%s372 + $0x20] sm:$0xff]
          %v515 = vld [vmem:[%s372 + $0x28] sm:$0xff]
          %v516 = vld [vmem:[%s372 + $0x30] sm:$0xff]
          %v517 = vld [vmem:[%s372 + $0x38] sm:$0xff]
          %v518 = vld [vmem:[%s372 + $0x40] sm:$0xff]
          %v519 = vld [vmem:[%s372 + $0x48] sm:$0xff]
          %v520 = vld [vmem:[%s372 + $0x50] sm:$0xff]
          %v521 = vld [vmem:[%s372 + $0x58] sm:$0xff]
          %v522 = vld [vmem:[%s372 + $0x60] sm:$0xff]
          %v523 = vld [vmem:[%s372 + $0x68] sm:$0xff]
          %v524 = vld [vmem:[%s372 + $0x70] sm:$0xff]
          %v525 = vld [vmem:[%s372 + $0x78] sm:$0xff]
          %v526 = vld [vmem:[%s381] sm:$0xff]
          %v527 = vld [vmem:[%s381 + $0x8] sm:$0xff]
          %v528 = vld [vmem:[%s381 + $0x10] sm:$0xff]
          %v529 = vld [vmem:[%s381 + $0x18] sm:$0xff]
          %v530 = vld [vmem:[%s381 + $0x20] sm:$0xff]
          %v531 = vld [vmem:[%s381 + $0x28] sm:$0xff]
          %v532 = vld [vmem:[%s381 + $0x30] sm:$0xff]
          %v533 = vld [vmem:[%s381 + $0x38] sm:$0xff]
          %v534 = vld [vmem:[%s381 + $0x40] sm:$0xff]
          %v535 = vld [vmem:[%s381 + $0x48] sm:$0xff]
          %v536 = vld [vmem:[%s381 + $0x50] sm:$0xff]
          %v537 = vld [vmem:[%s381 + $0x58] sm:$0xff]
          %v538 = vld [vmem:[%s381 + $0x60] sm:$0xff]
          %v539 = vld [vmem:[%s381 + $0x68] sm:$0xff]
          %v540 = vld [vmem:[%s381 + $0x70] sm:$0xff]
          %v541 = vld [vmem:[%s381 + $0x78] sm:$0xff]
          %v542 = vld [vmem:[%s381 + $0x80] sm:$0xff]
          %v543 = vld [vmem:[%s381 + $0x88] sm:$0xff]
          %v544 = vld [vmem:[%s381 + $0x90] sm:$0xff]
          %v545 = vld [vmem:[%s381 + $0x98] sm:$0xff]
          %v546 = vld [vmem:[%s381 + $0xa0] sm:$0xff]
          %v547 = vld [vmem:[%s381 + $0xa8] sm:$0xff]
          %v548 = vld [vmem:[%s381 + $0xb0] sm:$0xff]
          %v549 = vld [vmem:[%s381 + $0xb8] sm:$0xff]
          %v550 = vld [vmem:[%s381 + $0xc0] sm:$0xff]
          %v551 = vld [vmem:[%s381 + $0xc8] sm:$0xff]
          %v552 = vld [vmem:[%s381 + $0xd0] sm:$0xff]
          %v553 = vld [vmem:[%s381 + $0xd8] sm:$0xff]
          %v554 = vld [vmem:[%s381 + $0xe0] sm:$0xff]
          %v555 = vld [vmem:[%s381 + $0xe8] sm:$0xff]
          %v556 = vld [vmem:[%s381 + $0xf0] sm:$0xff]
          %v557 = vld [vmem:[%s381 + $0xf8] sm:$0xff]
          %v574 = vunpack.c.l.b16 %v510
          %v575 = vunpack.c.h.b16 %v510
          %v576 = vunpack.c.l.b16 %v511
          %v577 = vunpack.c.h.b16 %v511
          %v578 = vunpack.c.l.b16 %v512
          %v579 = vunpack.c.h.b16 %v512
          %v580 = vunpack.c.l.b16 %v513
          %v581 = vunpack.c.h.b16 %v513
          %v582 = vunpack.c.l.b16 %v514
          %v583 = vunpack.c.h.b16 %v514
          %v584 = vunpack.c.l.b16 %v515
          %v585 = vunpack.c.h.b16 %v515
          %v586 = vunpack.c.l.b16 %v516
          %v587 = vunpack.c.h.b16 %v516
          %v588 = vunpack.c.l.b16 %v517
          %v589 = vunpack.c.h.b16 %v517
          %v590 = vunpack.c.l.b16 %v518
          %v591 = vunpack.c.h.b16 %v518
          %v592 = vunpack.c.l.b16 %v519
          %v593 = vunpack.c.h.b16 %v519
          %v594 = vunpack.c.l.b16 %v520
          %v595 = vunpack.c.h.b16 %v520
          %v596 = vunpack.c.l.b16 %v521
          %v597 = vunpack.c.h.b16 %v521
          %v598 = vunpack.c.l.b16 %v522
          %v599 = vunpack.c.h.b16 %v522
          %v600 = vunpack.c.l.b16 %v523
          %v601 = vunpack.c.h.b16 %v523
          %v602 = vunpack.c.l.b16 %v524
          %v603 = vunpack.c.h.b16 %v524
          %v604 = vunpack.c.l.b16 %v525
          %v605 = vunpack.c.h.b16 %v525
          %v606 = vpack.c.b16 %v576, %v574
          %v607 = vpack.c.b16 %v577, %v575
          %v608 = vpack.c.b16 %v580, %v578
          %v609 = vpack.c.b16 %v581, %v579
          %v610 = vpack.c.b16 %v584, %v582
          %v611 = vpack.c.b16 %v585, %v583
          %v612 = vpack.c.b16 %v588, %v586
          %v613 = vpack.c.b16 %v589, %v587
          %v614 = vpack.c.b16 %v592, %v590
          %v615 = vpack.c.b16 %v593, %v591
          %v616 = vpack.c.b16 %v596, %v594
          %v617 = vpack.c.b16 %v597, %v595
          %v618 = vpack.c.b16 %v600, %v598
          %v619 = vpack.c.b16 %v601, %v599
          %v620 = vpack.c.b16 %v604, %v602
          %v621 = vpack.c.b16 %v605, %v603
          %v670 = vunpack.c.l.b16 %v526
          %v671 = vunpack.c.h.b16 %v526
          %v672 = vunpack.c.l.b16 %v527
          %v673 = vunpack.c.h.b16 %v527
          %v674 = vunpack.c.l.b16 %v528
          %v675 = vunpack.c.h.b16 %v528
          %v676 = vunpack.c.l.b16 %v529
          %v677 = vunpack.c.h.b16 %v529
          %v678 = vunpack.c.l.b16 %v530
          %v679 = vunpack.c.h.b16 %v530
          %v680 = vunpack.c.l.b16 %v531
          %v681 = vunpack.c.h.b16 %v531
          %v682 = vunpack.c.l.b16 %v532
          %v683 = vunpack.c.h.b16 %v532
          %v684 = vunpack.c.l.b16 %v533
          %v685 = vunpack.c.h.b16 %v533
          %v686 = vunpack.c.l.b16 %v534
          %v687 = vunpack.c.h.b16 %v534
          %v688 = vunpack.c.l.b16 %v535
          %v689 = vunpack.c.h.b16 %v535
          %v690 = vunpack.c.l.b16 %v536
          %v691 = vunpack.c.h.b16 %v536
          %v692 = vunpack.c.l.b16 %v537
          %v693 = vunpack.c.h.b16 %v537
          %v694 = vunpack.c.l.b16 %v538
          %v695 = vunpack.c.h.b16 %v538
          %v696 = vunpack.c.l.b16 %v539
          %v697 = vunpack.c.h.b16 %v539
          %v698 = vunpack.c.l.b16 %v540
          %v699 = vunpack.c.h.b16 %v540
          %v700 = vunpack.c.l.b16 %v541
          %v701 = vunpack.c.h.b16 %v541
          %v702 = vunpack.c.l.b16 %v542
          %v703 = vunpack.c.h.b16 %v542
          %v704 = vunpack.c.l.b16 %v543
          %v705 = vunpack.c.h.b16 %v543
          %v706 = vunpack.c.l.b16 %v544
          %v707 = vunpack.c.h.b16 %v544
          %v708 = vunpack.c.l.b16 %v545
          %v709 = vunpack.c.h.b16 %v545
          %v710 = vunpack.c.l.b16 %v546
          %v711 = vunpack.c.h.b16 %v546
          %v712 = vunpack.c.l.b16 %v547
          %v713 = vunpack.c.h.b16 %v547
          %v714 = vunpack.c.l.b16 %v548
          %v715 = vunpack.c.h.b16 %v548
          %v716 = vunpack.c.l.b16 %v549
          %v717 = vunpack.c.h.b16 %v549
          %v718 = vunpack.c.l.b16 %v550
          %v719 = vunpack.c.h.b16 %v550
          %v720 = vunpack.c.l.b16 %v551
          %v721 = vunpack.c.h.b16 %v551
          %v722 = vunpack.c.l.b16 %v552
          %v723 = vunpack.c.h.b16 %v552
          %v724 = vunpack.c.l.b16 %v553
          %v725 = vunpack.c.h.b16 %v553
          %v726 = vunpack.c.l.b16 %v554
          %v727 = vunpack.c.h.b16 %v554
          %v728 = vunpack.c.l.b16 %v555
          %v729 = vunpack.c.h.b16 %v555
          %v730 = vunpack.c.l.b16 %v556
          %v731 = vunpack.c.h.b16 %v556
          %v732 = vunpack.c.l.b16 %v557
          %v733 = vunpack.c.h.b16 %v557
          %v734 = vpack.c.b16 %v672, %v670
          %v735 = vpack.c.b16 %v673, %v671
          %v736 = vpack.c.b16 %v676, %v674
          %v737 = vpack.c.b16 %v677, %v675
          %v738 = vpack.c.b16 %v680, %v678
          %v739 = vpack.c.b16 %v681, %v679
          %v740 = vpack.c.b16 %v684, %v682
          %v741 = vpack.c.b16 %v685, %v683
          %v742 = vpack.c.b16 %v688, %v686
          %v743 = vpack.c.b16 %v689, %v687
          %v744 = vpack.c.b16 %v692, %v690
          %v745 = vpack.c.b16 %v693, %v691
          %v746 = vpack.c.b16 %v696, %v694
          %v747 = vpack.c.b16 %v697, %v695
          %v748 = vpack.c.b16 %v700, %v698
          %v749 = vpack.c.b16 %v701, %v699
          %v750 = vpack.c.b16 %v704, %v702
          %v751 = vpack.c.b16 %v705, %v703
          %v752 = vpack.c.b16 %v708, %v706
          %v753 = vpack.c.b16 %v709, %v707
          %v754 = vpack.c.b16 %v712, %v710
          %v755 = vpack.c.b16 %v713, %v711
          %v756 = vpack.c.b16 %v716, %v714
          %v757 = vpack.c.b16 %v717, %v715
          %v758 = vpack.c.b16 %v720, %v718
          %v759 = vpack.c.b16 %v721, %v719
          %v760 = vpack.c.b16 %v724, %v722
          %v761 = vpack.c.b16 %v725, %v723
          %v762 = vpack.c.b16 %v728, %v726
          %v763 = vpack.c.b16 %v729, %v727
          %v764 = vpack.c.b16 %v732, %v730
          %v765 = vpack.c.b16 %v733, %v731
          %798 = vmatprep.subr.bf16.mxu0 %v749
          %799 = vmatpush1.bf16.msra.mxu0 %v748
          %800 = vmatprep.subr.bf16.mxu0 %v747
          %801 = vmatpush1.bf16.msra.mxu0 %v746
          %802 = vmatprep.subr.bf16.mxu0 %v745
          %803 = vmatpush1.bf16.msra.mxu0 %v744
          %804 = vmatprep.subr.bf16.mxu0 %v743
          %805 = vmatpush1.bf16.msra.mxu0 %v742
          %806 = vmatprep.subr.bf16.mxu0 %v741
          %807 = vmatpush1.bf16.msra.mxu0 %v740
          %808 = vmatprep.subr.bf16.mxu0 %v739
          %809 = vmatpush1.bf16.msra.mxu0 %v738
          %810 = vmatprep.subr.bf16.mxu0 %v737
          %811 = vmatpush1.bf16.msra.mxu0 %v736
          %812 = vmatprep.subr.bf16.mxu0 %v735
          %813 = vmatpush1.bf16.msra.mxu0 %v734
          %814 = vmatprep.subr.bf16.mxu0 %v765
          %815 = vmatpush2.bf16.msra.mxu0 %v764
          %816 = vmatprep.subr.bf16.mxu0 %v763
          %817 = vmatpush2.bf16.msra.mxu0 %v762
          %818 = vmatprep.subr.bf16.mxu0 %v761
          %819 = vmatpush2.bf16.msra.mxu0 %v760
          %820 = vmatprep.subr.bf16.mxu0 %v759
          %821 = vmatpush2.bf16.msra.mxu0 %v758
          %822 = vmatprep.subr.bf16.mxu0 %v757
          %823 = vmatpush2.bf16.msra.mxu0 %v756
          %824 = vmatprep.subr.bf16.mxu0 %v755
          %825 = vmatpush2.bf16.msra.mxu0 %v754
          %826 = vmatprep.subr.bf16.mxu0 %v753
          %827 = vmatpush2.bf16.msra.mxu0 %v752
          %828 = vmatprep.subr.bf16.mxu0 %v751
          %829 = vmatpush2.bf16.msra.mxu0 %v750
          %830 = vmatprep.mubr.bf16.mxu0 %v607
          %831 = vmatmul.mubr.bf16.gmra.mxu0 %v606
          %v832 = vpop.f32.mrf.mxu0
          %v833 = vadd.f32 0.0, %v832
          %v834 = vpop.f32.mrf.mxu0
          %v835 = vadd.f32 0.0, %v834
          %v836 = vpop.f32.mrf.mxu0
          %v837 = vadd.f32 0.0, %v836
          %v838 = vpop.f32.mrf.mxu0
          %v839 = vadd.f32 0.0, %v838
          %840 = vmatprep.mubr.bf16.mxu0 %v609
          %841 = vmatmul.mubr.bf16.gmra.mxu0 %v608
          %v842 = vpop.f32.mrf.mxu0
          %v843 = vadd.f32 0.0, %v842
          %v844 = vpop.f32.mrf.mxu0
          %v845 = vadd.f32 0.0, %v844
          %v846 = vpop.f32.mrf.mxu0
          %v847 = vadd.f32 0.0, %v846
          %v848 = vpop.f32.mrf.mxu0
          %v849 = vadd.f32 0.0, %v848
          %850 = vmatprep.mubr.bf16.mxu0 %v611
          %851 = vmatmul.mubr.bf16.gmra.mxu0 %v610
          %v852 = vpop.f32.mrf.mxu0
          %v853 = vadd.f32 0.0, %v852
          %v854 = vpop.f32.mrf.mxu0
          %v855 = vadd.f32 0.0, %v854
          %v856 = vpop.f32.mrf.mxu0
          %v857 = vadd.f32 0.0, %v856
          %v858 = vpop.f32.mrf.mxu0
          %v859 = vadd.f32 0.0, %v858
          %860 = vmatprep.mubr.bf16.mxu0 %v613
          %861 = vmatmul.mubr.bf16.gmra.mxu0 %v612
          %v862 = vpop.f32.mrf.mxu0
          %v863 = vadd.f32 0.0, %v862
          %v864 = vpop.f32.mrf.mxu0
          %v865 = vadd.f32 0.0, %v864
          %v866 = vpop.f32.mrf.mxu0
          %v867 = vadd.f32 0.0, %v866
          %v868 = vpop.f32.mrf.mxu0
          %v869 = vadd.f32 0.0, %v868
          %870 = vmatprep.mubr.bf16.mxu0 %v615
          %871 = vmatmul.mubr.bf16.gmra.mxu0 %v614
          %v872 = vpop.f32.mrf.mxu0
          %v873 = vadd.f32 0.0, %v872
          %v874 = vpop.f32.mrf.mxu0
          %v875 = vadd.f32 0.0, %v874
          %v876 = vpop.f32.mrf.mxu0
          %v877 = vadd.f32 0.0, %v876
          %v878 = vpop.f32.mrf.mxu0
          %v879 = vadd.f32 0.0, %v878
          %880 = vmatprep.mubr.bf16.mxu0 %v617
          %881 = vmatmul.mubr.bf16.gmra.mxu0 %v616
          %v882 = vpop.f32.mrf.mxu0
          %v883 = vadd.f32 0.0, %v882
          %v884 = vpop.f32.mrf.mxu0
          %v885 = vadd.f32 0.0, %v884
          %v886 = vpop.f32.mrf.mxu0
          %v887 = vadd.f32 0.0, %v886
          %v888 = vpop.f32.mrf.mxu0
          %v889 = vadd.f32 0.0, %v888
          %890 = vmatprep.mubr.bf16.mxu0 %v619
          %891 = vmatmul.mubr.bf16.gmra.mxu0 %v618
          %v892 = vpop.f32.mrf.mxu0
          %v893 = vadd.f32 0.0, %v892
          %v894 = vpop.f32.mrf.mxu0
          %v895 = vadd.f32 0.0, %v894
          %v896 = vpop.f32.mrf.mxu0
          %v897 = vadd.f32 0.0, %v896
          %v898 = vpop.f32.mrf.mxu0
          %v899 = vadd.f32 0.0, %v898
          %900 = vmatprep.mubr.bf16.mxu0 %v621
          %901 = vmatmul.mubr.bf16.gmra.mxu0 %v620
          %v902 = vpop.f32.mrf.mxu0
          %v903 = vadd.f32 0.0, %v902
          %v904 = vpop.f32.mrf.mxu0
          %v905 = vadd.f32 0.0, %v904
          %v906 = vpop.f32.mrf.mxu0
          %v907 = vadd.f32 0.0, %v906
          %v908 = vpop.f32.mrf.mxu0
          %v909 = vadd.f32 0.0, %v908
          %910 = vdwg.mxu0
          %v911 = vld [vmem:[%s390] sm:$0xff]
          %v912 = vld [vmem:[%s390 + $0x8] sm:$0xff]
          %v913 = vld [vmem:[%s390 + $0x10] sm:$0xff]
          %v914 = vld [vmem:[%s390 + $0x18] sm:$0xff]
          %v915 = vld [vmem:[%s390 + $0x20] sm:$0xff]
          %v916 = vld [vmem:[%s390 + $0x28] sm:$0xff]
          %v917 = vld [vmem:[%s390 + $0x30] sm:$0xff]
          %v918 = vld [vmem:[%s390 + $0x38] sm:$0xff]
          %v919 = vld [vmem:[%s390 + $0x40] sm:$0xff]
          %v920 = vld [vmem:[%s390 + $0x48] sm:$0xff]
          %v921 = vld [vmem:[%s390 + $0x50] sm:$0xff]
          %v922 = vld [vmem:[%s390 + $0x58] sm:$0xff]
          %v923 = vld [vmem:[%s390 + $0x60] sm:$0xff]
          %v924 = vld [vmem:[%s390 + $0x68] sm:$0xff]
          %v925 = vld [vmem:[%s390 + $0x70] sm:$0xff]
          %v926 = vld [vmem:[%s390 + $0x78] sm:$0xff]
          %v927 = vld [vmem:[%s390 + $0x80] sm:$0xff]
          %v928 = vld [vmem:[%s390 + $0x88] sm:$0xff]
          %v929 = vld [vmem:[%s390 + $0x90] sm:$0xff]
          %v930 = vld [vmem:[%s390 + $0x98] sm:$0xff]
          %v931 = vld [vmem:[%s390 + $0xa0] sm:$0xff]
          %v932 = vld [vmem:[%s390 + $0xa8] sm:$0xff]
          %v933 = vld [vmem:[%s390 + $0xb0] sm:$0xff]
          %v934 = vld [vmem:[%s390 + $0xb8] sm:$0xff]
          %v935 = vld [vmem:[%s390 + $0xc0] sm:$0xff]
          %v936 = vld [vmem:[%s390 + $0xc8] sm:$0xff]
          %v937 = vld [vmem:[%s390 + $0xd0] sm:$0xff]
          %v938 = vld [vmem:[%s390 + $0xd8] sm:$0xff]
          %v939 = vld [vmem:[%s390 + $0xe0] sm:$0xff]
          %v940 = vld [vmem:[%s390 + $0xe8] sm:$0xff]
          %v941 = vld [vmem:[%s390 + $0xf0] sm:$0xff]
          %v942 = vld [vmem:[%s390 + $0xf8] sm:$0xff]
          %v975 = vunpack.c.l.b16 %v911
          %v976 = vunpack.c.h.b16 %v911
          %v977 = vunpack.c.l.b16 %v912
          %v978 = vunpack.c.h.b16 %v912
          %v979 = vunpack.c.l.b16 %v913
          %v980 = vunpack.c.h.b16 %v913
          %v981 = vunpack.c.l.b16 %v914
          %v982 = vunpack.c.h.b16 %v914
          %v983 = vunpack.c.l.b16 %v915
          %v984 = vunpack.c.h.b16 %v915
          %v985 = vunpack.c.l.b16 %v916
          %v986 = vunpack.c.h.b16 %v916
          %v987 = vunpack.c.l.b16 %v917
          %v988 = vunpack.c.h.b16 %v917
          %v989 = vunpack.c.l.b16 %v918
          %v990 = vunpack.c.h.b16 %v918
          %v991 = vunpack.c.l.b16 %v919
          %v992 = vunpack.c.h.b16 %v919
          %v993 = vunpack.c.l.b16 %v920
          %v994 = vunpack.c.h.b16 %v920
          %v995 = vunpack.c.l.b16 %v921
          %v996 = vunpack.c.h.b16 %v921
          %v997 = vunpack.c.l.b16 %v922
          %v998 = vunpack.c.h.b16 %v922
          %v999 = vunpack.c.l.b16 %v923
          %v1000 = vunpack.c.h.b16 %v923
          %v1001 = vunpack.c.l.b16 %v924
          %v1002 = vunpack.c.h.b16 %v924
          %v1003 = vunpack.c.l.b16 %v925
          %v1004 = vunpack.c.h.b16 %v925
          %v1005 = vunpack.c.l.b16 %v926
          %v1006 = vunpack.c.h.b16 %v926
          %v1007 = vunpack.c.l.b16 %v927
          %v1008 = vunpack.c.h.b16 %v927
          %v1009 = vunpack.c.l.b16 %v928
          %v1010 = vunpack.c.h.b16 %v928
          %v1011 = vunpack.c.l.b16 %v929
          %v1012 = vunpack.c.h.b16 %v929
          %v1013 = vunpack.c.l.b16 %v930
          %v1014 = vunpack.c.h.b16 %v930
          %v1015 = vunpack.c.l.b16 %v931
          %v1016 = vunpack.c.h.b16 %v931
          %v1017 = vunpack.c.l.b16 %v932
          %v1018 = vunpack.c.h.b16 %v932
          %v1019 = vunpack.c.l.b16 %v933
          %v1020 = vunpack.c.h.b16 %v933
          %v1021 = vunpack.c.l.b16 %v934
          %v1022 = vunpack.c.h.b16 %v934
          %v1023 = vunpack.c.l.b16 %v935
          %v1024 = vunpack.c.h.b16 %v935
          %v1025 = vunpack.c.l.b16 %v936
          %v1026 = vunpack.c.h.b16 %v936
          %v1027 = vunpack.c.l.b16 %v937
          %v1028 = vunpack.c.h.b16 %v937
          %v1029 = vunpack.c.l.b16 %v938
          %v1030 = vunpack.c.h.b16 %v938
          %v1031 = vunpack.c.l.b16 %v939
          %v1032 = vunpack.c.h.b16 %v939
          %v1033 = vunpack.c.l.b16 %v940
          %v1034 = vunpack.c.h.b16 %v940
          %v1035 = vunpack.c.l.b16 %v941
          %v1036 = vunpack.c.h.b16 %v941
          %v1037 = vunpack.c.l.b16 %v942
          %v1038 = vunpack.c.h.b16 %v942
          %v1039 = vpack.c.b16 %v977, %v975
          %v1040 = vpack.c.b16 %v978, %v976
          %v1041 = vpack.c.b16 %v981, %v979
          %v1042 = vpack.c.b16 %v982, %v980
          %v1043 = vpack.c.b16 %v985, %v983
          %v1044 = vpack.c.b16 %v986, %v984
          %v1045 = vpack.c.b16 %v989, %v987
          %v1046 = vpack.c.b16 %v990, %v988
          %v1047 = vpack.c.b16 %v993, %v991
          %v1048 = vpack.c.b16 %v994, %v992
          %v1049 = vpack.c.b16 %v997, %v995
          %v1050 = vpack.c.b16 %v998, %v996
          %v1051 = vpack.c.b16 %v1001, %v999
          %v1052 = vpack.c.b16 %v1002, %v1000
          %v1053 = vpack.c.b16 %v1005, %v1003
          %v1054 = vpack.c.b16 %v1006, %v1004
          %v1055 = vpack.c.b16 %v1009, %v1007
          %v1056 = vpack.c.b16 %v1010, %v1008
          %v1057 = vpack.c.b16 %v1013, %v1011
          %v1058 = vpack.c.b16 %v1014, %v1012
          %v1059 = vpack.c.b16 %v1017, %v1015
          %v1060 = vpack.c.b16 %v1018, %v1016
          %v1061 = vpack.c.b16 %v1021, %v1019
          %v1062 = vpack.c.b16 %v1022, %v1020
          %v1063 = vpack.c.b16 %v1025, %v1023
          %v1064 = vpack.c.b16 %v1026, %v1024
          %v1065 = vpack.c.b16 %v1029, %v1027
          %v1066 = vpack.c.b16 %v1030, %v1028
          %v1067 = vpack.c.b16 %v1033, %v1031
          %v1068 = vpack.c.b16 %v1034, %v1032
          %v1069 = vpack.c.b16 %v1037, %v1035
          %v1070 = vpack.c.b16 %v1038, %v1036
          %1103 = vmatprep.subr.bf16.mxu0 %v1054
          %1104 = vmatpush1.bf16.msra.mxu0 %v1053
          %1105 = vmatprep.subr.bf16.mxu0 %v1052
          %1106 = vmatpush1.bf16.msra.mxu0 %v1051
          %1107 = vmatprep.subr.bf16.mxu0 %v1050
          %1108 = vmatpush1.bf16.msra.mxu0 %v1049
          %1109 = vmatprep.subr.bf16.mxu0 %v1048
          %1110 = vmatpush1.bf16.msra.mxu0 %v1047
          %1111 = vmatprep.subr.bf16.mxu0 %v1046
          %1112 = vmatpush1.bf16.msra.mxu0 %v1045
          %1113 = vmatprep.subr.bf16.mxu0 %v1044
          %1114 = vmatpush1.bf16.msra.mxu0 %v1043
          %1115 = vmatprep.subr.bf16.mxu0 %v1042
          %1116 = vmatpush1.bf16.msra.mxu0 %v1041
          %1117 = vmatprep.subr.bf16.mxu0 %v1040
          %1118 = vmatpush1.bf16.msra.mxu0 %v1039
          %1119 = vmatprep.subr.bf16.mxu0 %v1070
          %1120 = vmatpush2.bf16.msra.mxu0 %v1069
          %1121 = vmatprep.subr.bf16.mxu0 %v1068
          %1122 = vmatpush2.bf16.msra.mxu0 %v1067
          %1123 = vmatprep.subr.bf16.mxu0 %v1066
          %1124 = vmatpush2.bf16.msra.mxu0 %v1065
          %1125 = vmatprep.subr.bf16.mxu0 %v1064
          %1126 = vmatpush2.bf16.msra.mxu0 %v1063
          %1127 = vmatprep.subr.bf16.mxu0 %v1062
          %1128 = vmatpush2.bf16.msra.mxu0 %v1061
          %1129 = vmatprep.subr.bf16.mxu0 %v1060
          %1130 = vmatpush2.bf16.msra.mxu0 %v1059
          %1131 = vmatprep.subr.bf16.mxu0 %v1058
          %1132 = vmatpush2.bf16.msra.mxu0 %v1057
          %1133 = vmatprep.subr.bf16.mxu0 %v1056
          %1134 = vmatpush2.bf16.msra.mxu0 %v1055
          %1135 = vmatprep.mubr.bf16.mxu0 %v607
          %1136 = vmatmul.mubr.bf16.gmra.mxu0 %v606
          %v1137 = vpop.f32.mrf.mxu0
          %v1138 = vadd.f32 0.0, %v1137
          %v1139 = vpop.f32.mrf.mxu0
          %v1140 = vadd.f32 0.0, %v1139
          %v1141 = vpop.f32.mrf.mxu0
          %v1142 = vadd.f32 0.0, %v1141
          %v1143 = vpop.f32.mrf.mxu0
          %v1144 = vadd.f32 0.0, %v1143
          %1145 = vmatprep.mubr.bf16.mxu0 %v609
          %1146 = vmatmul.mubr.bf16.gmra.mxu0 %v608
          %v1147 = vpop.f32.mrf.mxu0
          %v1148 = vadd.f32 0.0, %v1147
          %v1149 = vpop.f32.mrf.mxu0
          %v1150 = vadd.f32 0.0, %v1149
          %v1151 = vpop.f32.mrf.mxu0
          %v1152 = vadd.f32 0.0, %v1151
          %v1153 = vpop.f32.mrf.mxu0
          %v1154 = vadd.f32 0.0, %v1153
          %1155 = vmatprep.mubr.bf16.mxu0 %v611
          %1156 = vmatmul.mubr.bf16.gmra.mxu0 %v610
          %v1157 = vpop.f32.mrf.mxu0
          %v1158 = vadd.f32 0.0, %v1157
          %v1159 = vpop.f32.mrf.mxu0
          %v1160 = vadd.f32 0.0, %v1159
          %v1161 = vpop.f32.mrf.mxu0
          %v1162 = vadd.f32 0.0, %v1161
          %v1163 = vpop.f32.mrf.mxu0
          %v1164 = vadd.f32 0.0, %v1163
          %1165 = vmatprep.mubr.bf16.mxu0 %v613
          %1166 = vmatmul.mubr.bf16.gmra.mxu0 %v612
          %v1167 = vpop.f32.mrf.mxu0
          %v1168 = vadd.f32 0.0, %v1167
          %v1169 = vpop.f32.mrf.mxu0
          %v1170 = vadd.f32 0.0, %v1169
          %v1171 = vpop.f32.mrf.mxu0
          %v1172 = vadd.f32 0.0, %v1171
          %v1173 = vpop.f32.mrf.mxu0
          %v1174 = vadd.f32 0.0, %v1173
          %1175 = vmatprep.mubr.bf16.mxu0 %v615
          %1176 = vmatmul.mubr.bf16.gmra.mxu0 %v614
          %v1177 = vpop.f32.mrf.mxu0
          %v1178 = vadd.f32 0.0, %v1177
          %v1179 = vpop.f32.mrf.mxu0
          %v1180 = vadd.f32 0.0, %v1179
          %v1181 = vpop.f32.mrf.mxu0
          %v1182 = vadd.f32 0.0, %v1181
          %v1183 = vpop.f32.mrf.mxu0
          %v1184 = vadd.f32 0.0, %v1183
          %1185 = vmatprep.mubr.bf16.mxu0 %v617
          %1186 = vmatmul.mubr.bf16.gmra.mxu0 %v616
          %v1187 = vpop.f32.mrf.mxu0
          %v1188 = vadd.f32 0.0, %v1187
          %v1189 = vpop.f32.mrf.mxu0
          %v1190 = vadd.f32 0.0, %v1189
          %v1191 = vpop.f32.mrf.mxu0
          %v1192 = vadd.f32 0.0, %v1191
          %v1193 = vpop.f32.mrf.mxu0
          %v1194 = vadd.f32 0.0, %v1193
          %1195 = vmatprep.mubr.bf16.mxu0 %v619
          %1196 = vmatmul.mubr.bf16.gmra.mxu0 %v618
          %v1197 = vpop.f32.mrf.mxu0
          %v1198 = vadd.f32 0.0, %v1197
          %v1199 = vpop.f32.mrf.mxu0
          %v1200 = vadd.f32 0.0, %v1199
          %v1201 = vpop.f32.mrf.mxu0
          %v1202 = vadd.f32 0.0, %v1201
          %v1203 = vpop.f32.mrf.mxu0
          %v1204 = vadd.f32 0.0, %v1203
          %1205 = vmatprep.mubr.bf16.mxu0 %v621
          %1206 = vmatmul.mubr.bf16.gmra.mxu0 %v620
          %v1207 = vpop.f32.mrf.mxu0
          %v1208 = vadd.f32 0.0, %v1207
          %v1209 = vpop.f32.mrf.mxu0
          %v1210 = vadd.f32 0.0, %v1209
          %v1211 = vpop.f32.mrf.mxu0
          %v1212 = vadd.f32 0.0, %v1211
          %v1213 = vpop.f32.mrf.mxu0
          %v1214 = vadd.f32 0.0, %v1213
          %1215 = vdwg.mxu0
          %v1216 = vxor.u32 %v833, 2147483648
          %v1217 = vxor.u32 %v835, 2147483648
          %v1218 = vxor.u32 %v837, 2147483648
          %v1219 = vxor.u32 %v839, 2147483648
          %v1220 = vxor.u32 %v843, 2147483648
          %v1221 = vxor.u32 %v845, 2147483648
          %v1222 = vxor.u32 %v847, 2147483648
          %v1223 = vxor.u32 %v849, 2147483648
          %v1224 = vxor.u32 %v853, 2147483648
          %v1225 = vxor.u32 %v855, 2147483648
          %v1226 = vxor.u32 %v857, 2147483648
          %v1227 = vxor.u32 %v859, 2147483648
          %v1228 = vxor.u32 %v863, 2147483648
          %v1229 = vxor.u32 %v865, 2147483648
          %v1230 = vxor.u32 %v867, 2147483648
          %v1231 = vxor.u32 %v869, 2147483648
          %v1232 = vxor.u32 %v873, 2147483648
          %v1233 = vxor.u32 %v875, 2147483648
          %v1234 = vxor.u32 %v877, 2147483648
          %v1235 = vxor.u32 %v879, 2147483648
          %v1236 = vxor.u32 %v883, 2147483648
          %v1237 = vxor.u32 %v885, 2147483648
          %v1238 = vxor.u32 %v887, 2147483648
          %v1239 = vxor.u32 %v889, 2147483648
          %v1240 = vxor.u32 %v893, 2147483648
          %v1241 = vxor.u32 %v895, 2147483648
          %v1242 = vxor.u32 %v897, 2147483648
          %v1243 = vxor.u32 %v899, 2147483648
          %v1244 = vxor.u32 %v903, 2147483648
          %v1245 = vxor.u32 %v905, 2147483648
          %v1246 = vxor.u32 %v907, 2147483648
          %v1247 = vxor.u32 %v909, 2147483648
          %v1248 = vmul.f32 %v1216, 1.442695
          %v1249 = vpow.pop %v1248
          %v1250 = vmul.f32 %v1217, 1.442695
          %v1251 = vpow.pop %v1250
          %v1252 = vmul.f32 %v1218, 1.442695
          %v1253 = vpow.pop %v1252
          %v1254 = vmul.f32 %v1219, 1.442695
          %v1255 = vpow.pop %v1254
          %v1256 = vmul.f32 %v1220, 1.442695
          %v1257 = vpow.pop %v1256
          %v1258 = vmul.f32 %v1221, 1.442695
          %v1259 = vpow.pop %v1258
          %v1260 = vmul.f32 %v1222, 1.442695
          %v1261 = vpow.pop %v1260
          %v1262 = vmul.f32 %v1223, 1.442695
          %v1263 = vpow.pop %v1262
          %v1264 = vmul.f32 %v1224, 1.442695
          %v1265 = vpow.pop %v1264
          %v1266 = vmul.f32 %v1225, 1.442695
          %v1267 = vpow.pop %v1266
          %v1268 = vmul.f32 %v1226, 1.442695
          %v1269 = vpow.pop %v1268
          %v1270 = vmul.f32 %v1227, 1.442695
          %v1271 = vpow.pop %v1270
          %v1272 = vmul.f32 %v1228, 1.442695
          %v1273 = vpow.pop %v1272
          %v1274 = vmul.f32 %v1229, 1.442695
          %v1275 = vpow.pop %v1274
          %v1276 = vmul.f32 %v1230, 1.442695
          %v1277 = vpow.pop %v1276
          %v1278 = vmul.f32 %v1231, 1.442695
          %v1279 = vpow.pop %v1278
          %v1280 = vmul.f32 %v1232, 1.442695
          %v1281 = vpow.pop %v1280
          %v1282 = vmul.f32 %v1233, 1.442695
          %v1283 = vpow.pop %v1282
          %v1284 = vmul.f32 %v1234, 1.442695
          %v1285 = vpow.pop %v1284
          %v1286 = vmul.f32 %v1235, 1.442695
          %v1287 = vpow.pop %v1286
          %v1288 = vmul.f32 %v1236, 1.442695
          %v1289 = vpow.pop %v1288
          %v1290 = vmul.f32 %v1237, 1.442695
          %v1291 = vpow.pop %v1290
          %v1292 = vmul.f32 %v1238, 1.442695
          %v1293 = vpow.pop %v1292
          %v1294 = vmul.f32 %v1239, 1.442695
          %v1295 = vpow.pop %v1294
          %v1296 = vmul.f32 %v1240, 1.442695
          %v1297 = vpow.pop %v1296
          %v1298 = vmul.f32 %v1241, 1.442695
          %v1299 = vpow.pop %v1298
          %v1300 = vmul.f32 %v1242, 1.442695
          %v1301 = vpow.pop %v1300
          %v1302 = vmul.f32 %v1243, 1.442695
          %v1303 = vpow.pop %v1302
          %v1304 = vmul.f32 %v1244, 1.442695
          %v1305 = vpow.pop %v1304
          %v1306 = vmul.f32 %v1245, 1.442695
          %v1307 = vpow.pop %v1306
          %v1308 = vmul.f32 %v1246, 1.442695
          %v1309 = vpow.pop %v1308
          %v1310 = vmul.f32 %v1247, 1.442695
          %v1311 = vpow.pop %v1310
          %v1312 = vadd.f32 %v1249, 1.0
          %v1313 = vadd.f32 %v1251, 1.0
          %v1314 = vadd.f32 %v1253, 1.0
          %v1315 = vadd.f32 %v1255, 1.0
          %v1316 = vadd.f32 %v1257, 1.0
          %v1317 = vadd.f32 %v1259, 1.0
          %v1318 = vadd.f32 %v1261, 1.0
          %v1319 = vadd.f32 %v1263, 1.0
          %v1320 = vadd.f32 %v1265, 1.0
          %v1321 = vadd.f32 %v1267, 1.0
          %v1322 = vadd.f32 %v1269, 1.0
          %v1323 = vadd.f32 %v1271, 1.0
          %v1324 = vadd.f32 %v1273, 1.0
          %v1325 = vadd.f32 %v1275, 1.0
          %v1326 = vadd.f32 %v1277, 1.0
          %v1327 = vadd.f32 %v1279, 1.0
          %v1328 = vadd.f32 %v1281, 1.0
          %v1329 = vadd.f32 %v1283, 1.0
          %v1330 = vadd.f32 %v1285, 1.0
          %v1331 = vadd.f32 %v1287, 1.0
          %v1332 = vadd.f32 %v1289, 1.0
          %v1333 = vadd.f32 %v1291, 1.0
          %v1334 = vadd.f32 %v1293, 1.0
          %v1335 = vadd.f32 %v1295, 1.0
          %v1336 = vadd.f32 %v1297, 1.0
          %v1337 = vadd.f32 %v1299, 1.0
          %v1338 = vadd.f32 %v1301, 1.0
          %v1339 = vadd.f32 %v1303, 1.0
          %v1340 = vadd.f32 %v1305, 1.0
          %v1341 = vadd.f32 %v1307, 1.0
          %v1342 = vadd.f32 %v1309, 1.0
          %v1343 = vadd.f32 %v1311, 1.0
          %v1344 = vrcp.pop %v1312
          %v1345 = vmul.f32 1.0, %v1344
          %v1346 = vrcp.pop %v1313
          %v1347 = vmul.f32 1.0, %v1346
          %v1348 = vrcp.pop %v1314
          %v1349 = vmul.f32 1.0, %v1348
          %v1350 = vrcp.pop %v1315
          %v1351 = vmul.f32 1.0, %v1350
          %v1352 = vrcp.pop %v1316
          %v1353 = vmul.f32 1.0, %v1352
          %v1354 = vrcp.pop %v1317
          %v1355 = vmul.f32 1.0, %v1354
          %v1356 = vrcp.pop %v1318
          %v1357 = vmul.f32 1.0, %v1356
          %v1358 = vrcp.pop %v1319
          %v1359 = vmul.f32 1.0, %v1358
          %v1360 = vrcp.pop %v1320
          %v1361 = vmul.f32 1.0, %v1360
          %v1362 = vrcp.pop %v1321
          %v1363 = vmul.f32 1.0, %v1362
          %v1364 = vrcp.pop %v1322
          %v1365 = vmul.f32 1.0, %v1364
          %v1366 = vrcp.pop %v1323
          %v1367 = vmul.f32 1.0, %v1366
          %v1368 = vrcp.pop %v1324
          %v1369 = vmul.f32 1.0, %v1368
          %v1370 = vrcp.pop %v1325
          %v1371 = vmul.f32 1.0, %v1370
          %v1372 = vrcp.pop %v1326
          %v1373 = vmul.f32 1.0, %v1372
          %v1374 = vrcp.pop %v1327
          %v1375 = vmul.f32 1.0, %v1374
          %v1376 = vrcp.pop %v1328
          %v1377 = vmul.f32 1.0, %v1376
          %v1378 = vrcp.pop %v1329
          %v1379 = vmul.f32 1.0, %v1378
          %v1380 = vrcp.pop %v1330
          %v1381 = vmul.f32 1.0, %v1380
          %v1382 = vrcp.pop %v1331
          %v1383 = vmul.f32 1.0, %v1382
          %v1384 = vrcp.pop %v1332
          %v1385 = vmul.f32 1.0, %v1384
          %v1386 = vrcp.pop %v1333
          %v1387 = vmul.f32 1.0, %v1386
          %v1388 = vrcp.pop %v1334
          %v1389 = vmul.f32 1.0, %v1388
          %v1390 = vrcp.pop %v1335
          %v1391 = vmul.f32 1.0, %v1390
          %v1392 = vrcp.pop %v1336
          %v1393 = vmul.f32 1.0, %v1392
          %v1394 = vrcp.pop %v1337
          %v1395 = vmul.f32 1.0, %v1394
          %v1396 = vrcp.pop %v1338
          %v1397 = vmul.f32 1.0, %v1396
          %v1398 = vrcp.pop %v1339
          %v1399 = vmul.f32 1.0, %v1398
          %v1400 = vrcp.pop %v1340
          %v1401 = vmul.f32 1.0, %v1400
          %v1402 = vrcp.pop %v1341
          %v1403 = vmul.f32 1.0, %v1402
          %v1404 = vrcp.pop %v1342
          %v1405 = vmul.f32 1.0, %v1404
          %v1406 = vrcp.pop %v1343
          %v1407 = vmul.f32 1.0, %v1406
          %v1408 = vmul.f32 %v833, %v1345
          %v1409 = vmul.f32 %v835, %v1347
          %v1410 = vmul.f32 %v837, %v1349
          %v1411 = vmul.f32 %v839, %v1351
          %v1412 = vmul.f32 %v843, %v1353
          %v1413 = vmul.f32 %v845, %v1355
          %v1414 = vmul.f32 %v847, %v1357
          %v1415 = vmul.f32 %v849, %v1359
          %v1416 = vmul.f32 %v853, %v1361
          %v1417 = vmul.f32 %v855, %v1363
          %v1418 = vmul.f32 %v857, %v1365
          %v1419 = vmul.f32 %v859, %v1367
          %v1420 = vmul.f32 %v863, %v1369
          %v1421 = vmul.f32 %v865, %v1371
          %v1422 = vmul.f32 %v867, %v1373
          %v1423 = vmul.f32 %v869, %v1375
          %v1424 = vmul.f32 %v873, %v1377
          %v1425 = vmul.f32 %v875, %v1379
          %v1426 = vmul.f32 %v877, %v1381
          %v1427 = vmul.f32 %v879, %v1383
          %v1428 = vmul.f32 %v883, %v1385
          %v1429 = vmul.f32 %v885, %v1387
          %v1430 = vmul.f32 %v887, %v1389
          %v1431 = vmul.f32 %v889, %v1391
          %v1432 = vmul.f32 %v893, %v1393
          %v1433 = vmul.f32 %v895, %v1395
          %v1434 = vmul.f32 %v897, %v1397
          %v1435 = vmul.f32 %v899, %v1399
          %v1436 = vmul.f32 %v903, %v1401
          %v1437 = vmul.f32 %v905, %v1403
          %v1438 = vmul.f32 %v907, %v1405
          %v1439 = vmul.f32 %v909, %v1407
          %v1440 = vmul.f32 %v1408, %v1138
          %v1441 = vmul.f32 %v1409, %v1140
          %v1442 = vmul.f32 %v1410, %v1142
          %v1443 = vmul.f32 %v1411, %v1144
          %v1444 = vmul.f32 %v1412, %v1148
          %v1445 = vmul.f32 %v1413, %v1150
          %v1446 = vmul.f32 %v1414, %v1152
          %v1447 = vmul.f32 %v1415, %v1154
          %v1448 = vmul.f32 %v1416, %v1158
          %v1449 = vmul.f32 %v1417, %v1160
          %v1450 = vmul.f32 %v1418, %v1162
          %v1451 = vmul.f32 %v1419, %v1164
          %v1452 = vmul.f32 %v1420, %v1168
          %v1453 = vmul.f32 %v1421, %v1170
          %v1454 = vmul.f32 %v1422, %v1172
          %v1455 = vmul.f32 %v1423, %v1174
          %v1456 = vmul.f32 %v1424, %v1178
          %v1457 = vmul.f32 %v1425, %v1180
          %v1458 = vmul.f32 %v1426, %v1182
          %v1459 = vmul.f32 %v1427, %v1184
          %v1460 = vmul.f32 %v1428, %v1188
          %v1461 = vmul.f32 %v1429, %v1190
          %v1462 = vmul.f32 %v1430, %v1192
          %v1463 = vmul.f32 %v1431, %v1194
          %v1464 = vmul.f32 %v1432, %v1198
          %v1465 = vmul.f32 %v1433, %v1200
          %v1466 = vmul.f32 %v1434, %v1202
          %v1467 = vmul.f32 %v1435, %v1204
          %v1468 = vmul.f32 %v1436, %v1208
          %v1469 = vmul.f32 %v1437, %v1210
          %v1470 = vmul.f32 %v1438, %v1212
          %v1471 = vmul.f32 %v1439, %v1214
          %v1472 = vld [vmem:[%s466] sm:$0xff]
          %v1473 = vld [vmem:[%s466 + $0x8] sm:$0xff]
          %v1474 = vld [vmem:[%s466 + $0x10] sm:$0xff]
          %v1475 = vld [vmem:[%s466 + $0x18] sm:$0xff]
          %v1476 = vld [vmem:[%s466 + $0x20] sm:$0xff]
          %v1477 = vld [vmem:[%s466 + $0x28] sm:$0xff]
          %v1478 = vld [vmem:[%s466 + $0x30] sm:$0xff]
          %v1479 = vld [vmem:[%s466 + $0x38] sm:$0xff]
          %v1480 = vld [vmem:[%s466 + $0x40] sm:$0xff]
          %v1481 = vld [vmem:[%s466 + $0x48] sm:$0xff]
          %v1482 = vld [vmem:[%s466 + $0x50] sm:$0xff]
          %v1483 = vld [vmem:[%s466 + $0x58] sm:$0xff]
          %v1484 = vld [vmem:[%s466 + $0x60] sm:$0xff]
          %v1485 = vld [vmem:[%s466 + $0x68] sm:$0xff]
          %v1486 = vld [vmem:[%s466 + $0x70] sm:$0xff]
          %v1487 = vld [vmem:[%s466 + $0x78] sm:$0xff]
          %1489 = vset.pattern.permute.xlu0 0
          %1490 = vperm.xlu0 %1489, %v1472
          %v1491 = vpop.permute.xlu0 %1490
          %1494 = vset.pattern.permute.xlu0 0
          %1495 = vperm.xlu0 %1494, %v1473
          %v1496 = vpop.permute.xlu0 %1495
          %1499 = vset.pattern.permute.xlu0 0
          %1500 = vperm.xlu0 %1499, %v1474
          %v1501 = vpop.permute.xlu0 %1500
          %1504 = vset.pattern.permute.xlu0 0
          %1505 = vperm.xlu0 %1504, %v1475
          %v1506 = vpop.permute.xlu0 %1505
          %1509 = vset.pattern.permute.xlu0 0
          %1510 = vperm.xlu0 %1509, %v1476
          %v1511 = vpop.permute.xlu0 %1510
          %1514 = vset.pattern.permute.xlu0 0
          %1515 = vperm.xlu0 %1514, %v1477
          %v1516 = vpop.permute.xlu0 %1515
          %1519 = vset.pattern.permute.xlu0 0
          %1520 = vperm.xlu0 %1519, %v1478
          %v1521 = vpop.permute.xlu0 %1520
          %1524 = vset.pattern.permute.xlu0 0
          %1525 = vperm.xlu0 %1524, %v1479
          %v1526 = vpop.permute.xlu0 %1525
          %1529 = vset.pattern.permute.xlu0 0
          %1530 = vperm.xlu0 %1529, %v1480
          %v1531 = vpop.permute.xlu0 %1530
          %1534 = vset.pattern.permute.xlu0 0
          %1535 = vperm.xlu0 %1534, %v1481
          %v1536 = vpop.permute.xlu0 %1535
          %1539 = vset.pattern.permute.xlu0 0
          %1540 = vperm.xlu0 %1539, %v1482
          %v1541 = vpop.permute.xlu0 %1540
          %1544 = vset.pattern.permute.xlu0 0
          %1545 = vperm.xlu0 %1544, %v1483
          %v1546 = vpop.permute.xlu0 %1545
          %1549 = vset.pattern.permute.xlu0 0
          %1550 = vperm.xlu0 %1549, %v1484
          %v1551 = vpop.permute.xlu0 %1550
          %1554 = vset.pattern.permute.xlu0 0
          %1555 = vperm.xlu0 %1554, %v1485
          %v1556 = vpop.permute.xlu0 %1555
          %1559 = vset.pattern.permute.xlu0 0
          %1560 = vperm.xlu0 %1559, %v1486
          %v1561 = vpop.permute.xlu0 %1560
          %1564 = vset.pattern.permute.xlu0 0
          %1565 = vperm.xlu0 %1564, %v1487
          %v1566 = vpop.permute.xlu0 %1565
          %v1568 = vmul.f32 %v1440, %v1491
          %v1569 = vmul.f32 %v1441, %v1491
          %v1570 = vmul.f32 %v1442, %v1496
          %v1571 = vmul.f32 %v1443, %v1496
          %v1572 = vmul.f32 %v1444, %v1501
          %v1573 = vmul.f32 %v1445, %v1501
          %v1574 = vmul.f32 %v1446, %v1506
          %v1575 = vmul.f32 %v1447, %v1506
          %v1576 = vmul.f32 %v1448, %v1511
          %v1577 = vmul.f32 %v1449, %v1511
          %v1578 = vmul.f32 %v1450, %v1516
          %v1579 = vmul.f32 %v1451, %v1516
          %v1580 = vmul.f32 %v1452, %v1521
          %v1581 = vmul.f32 %v1453, %v1521
          %v1582 = vmul.f32 %v1454, %v1526
          %v1583 = vmul.f32 %v1455, %v1526
          %v1584 = vmul.f32 %v1456, %v1531
          %v1585 = vmul.f32 %v1457, %v1531
          %v1586 = vmul.f32 %v1458, %v1536
          %v1587 = vmul.f32 %v1459, %v1536
          %v1588 = vmul.f32 %v1460, %v1541
          %v1589 = vmul.f32 %v1461, %v1541
          %v1590 = vmul.f32 %v1462, %v1546
          %v1591 = vmul.f32 %v1463, %v1546
          %v1592 = vmul.f32 %v1464, %v1551
          %v1593 = vmul.f32 %v1465, %v1551
          %v1594 = vmul.f32 %v1466, %v1556
          %v1595 = vmul.f32 %v1467, %v1556
          %v1596 = vmul.f32 %v1468, %v1561
          %v1597 = vmul.f32 %v1469, %v1561
          %v1598 = vmul.f32 %v1470, %v1566
          %v1599 = vmul.f32 %v1471, %v1566
          %v1600 = vld [vmem:[#allocation2] sm:$0xff]
          %v1601 = vld [vmem:[#allocation2 + $0x8] sm:$0xff]
          %v1602 = vld [vmem:[#allocation2 + $0x10] sm:$0xff]
          %v1603 = vld [vmem:[#allocation2 + $0x18] sm:$0xff]
          %v1604 = vld [vmem:[#allocation2 + $0x20] sm:$0xff]
          %v1605 = vld [vmem:[#allocation2 + $0x28] sm:$0xff]
          %v1606 = vld [vmem:[#allocation2 + $0x30] sm:$0xff]
          %v1607 = vld [vmem:[#allocation2 + $0x38] sm:$0xff]
          %v1608 = vld [vmem:[#allocation2 + $0x40] sm:$0xff]
          %v1609 = vld [vmem:[#allocation2 + $0x48] sm:$0xff]
          %v1610 = vld [vmem:[#allocation2 + $0x50] sm:$0xff]
          %v1611 = vld [vmem:[#allocation2 + $0x58] sm:$0xff]
          %v1612 = vld [vmem:[#allocation2 + $0x60] sm:$0xff]
          %v1613 = vld [vmem:[#allocation2 + $0x68] sm:$0xff]
          %v1614 = vld [vmem:[#allocation2 + $0x70] sm:$0xff]
          %v1615 = vld [vmem:[#allocation2 + $0x78] sm:$0xff]
          %v1616 = vld [vmem:[#allocation2 + $0x80] sm:$0xff]
          %v1617 = vld [vmem:[#allocation2 + $0x88] sm:$0xff]
          %v1618 = vld [vmem:[#allocation2 + $0x90] sm:$0xff]
          %v1619 = vld [vmem:[#allocation2 + $0x98] sm:$0xff]
          %v1620 = vld [vmem:[#allocation2 + $0xa0] sm:$0xff]
          %v1621 = vld [vmem:[#allocation2 + $0xa8] sm:$0xff]
          %v1622 = vld [vmem:[#allocation2 + $0xb0] sm:$0xff]
          %v1623 = vld [vmem:[#allocation2 + $0xb8] sm:$0xff]
          %v1624 = vld [vmem:[#allocation2 + $0xc0] sm:$0xff]
          %v1625 = vld [vmem:[#allocation2 + $0xc8] sm:$0xff]
          %v1626 = vld [vmem:[#allocation2 + $0xd0] sm:$0xff]
          %v1627 = vld [vmem:[#allocation2 + $0xd8] sm:$0xff]
          %v1628 = vld [vmem:[#allocation2 + $0xe0] sm:$0xff]
          %v1629 = vld [vmem:[#allocation2 + $0xe8] sm:$0xff]
          %v1630 = vld [vmem:[#allocation2 + $0xf0] sm:$0xff]
          %v1631 = vld [vmem:[#allocation2 + $0xf8] sm:$0xff]
          %v1632 = vpack.c.bf16 %v1570, %v1568
          %v1633 = vpack.c.bf16 %v1571, %v1569
          %v1634 = vpack.c.bf16 %v1574, %v1572
          %v1635 = vpack.c.bf16 %v1575, %v1573
          %v1636 = vpack.c.bf16 %v1578, %v1576
          %v1637 = vpack.c.bf16 %v1579, %v1577
          %v1638 = vpack.c.bf16 %v1582, %v1580
          %v1639 = vpack.c.bf16 %v1583, %v1581
          %v1640 = vpack.c.bf16 %v1586, %v1584
          %v1641 = vpack.c.bf16 %v1587, %v1585
          %v1642 = vpack.c.bf16 %v1590, %v1588
          %v1643 = vpack.c.bf16 %v1591, %v1589
          %v1644 = vpack.c.bf16 %v1594, %v1592
          %v1645 = vpack.c.bf16 %v1595, %v1593
          %v1646 = vpack.c.bf16 %v1598, %v1596
          %v1647 = vpack.c.bf16 %v1599, %v1597
          %v1648 = vld [vmem:[%s399] sm:$0xff]
          %v1649 = vld [vmem:[%s399 + $0x8] sm:$0xff]
          %v1650 = vld [vmem:[%s399 + $0x10] sm:$0xff]
          %v1651 = vld [vmem:[%s399 + $0x18] sm:$0xff]
          %v1652 = vld [vmem:[%s399 + $0x20] sm:$0xff]
          %v1653 = vld [vmem:[%s399 + $0x28] sm:$0xff]
          %v1654 = vld [vmem:[%s399 + $0x30] sm:$0xff]
          %v1655 = vld [vmem:[%s399 + $0x38] sm:$0xff]
          %v1656 = vld [vmem:[%s399 + $0x40] sm:$0xff]
          %v1657 = vld [vmem:[%s399 + $0x48] sm:$0xff]
          %v1658 = vld [vmem:[%s399 + $0x50] sm:$0xff]
          %v1659 = vld [vmem:[%s399 + $0x58] sm:$0xff]
          %v1660 = vld [vmem:[%s399 + $0x60] sm:$0xff]
          %v1661 = vld [vmem:[%s399 + $0x68] sm:$0xff]
          %v1662 = vld [vmem:[%s399 + $0x70] sm:$0xff]
          %v1663 = vld [vmem:[%s399 + $0x78] sm:$0xff]
          %v1664 = vld [vmem:[%s399 + $0x80] sm:$0xff]
          %v1665 = vld [vmem:[%s399 + $0x88] sm:$0xff]
          %v1666 = vld [vmem:[%s399 + $0x90] sm:$0xff]
          %v1667 = vld [vmem:[%s399 + $0x98] sm:$0xff]
          %v1668 = vld [vmem:[%s399 + $0xa0] sm:$0xff]
          %v1669 = vld [vmem:[%s399 + $0xa8] sm:$0xff]
          %v1670 = vld [vmem:[%s399 + $0xb0] sm:$0xff]
          %v1671 = vld [vmem:[%s399 + $0xb8] sm:$0xff]
          %v1672 = vld [vmem:[%s399 + $0xc0] sm:$0xff]
          %v1673 = vld [vmem:[%s399 + $0xc8] sm:$0xff]
          %v1674 = vld [vmem:[%s399 + $0xd0] sm:$0xff]
          %v1675 = vld [vmem:[%s399 + $0xd8] sm:$0xff]
          %v1676 = vld [vmem:[%s399 + $0xe0] sm:$0xff]
          %v1677 = vld [vmem:[%s399 + $0xe8] sm:$0xff]
          %v1678 = vld [vmem:[%s399 + $0xf0] sm:$0xff]
          %v1679 = vld [vmem:[%s399 + $0xf8] sm:$0xff]
          %v1712 = vunpack.c.l.b16 %v1648
          %v1713 = vunpack.c.h.b16 %v1648
          %v1714 = vunpack.c.l.b16 %v1649
          %v1715 = vunpack.c.h.b16 %v1649
          %v1716 = vunpack.c.l.b16 %v1650
          %v1717 = vunpack.c.h.b16 %v1650
          %v1718 = vunpack.c.l.b16 %v1651
          %v1719 = vunpack.c.h.b16 %v1651
          %v1720 = vunpack.c.l.b16 %v1652
          %v1721 = vunpack.c.h.b16 %v1652
          %v1722 = vunpack.c.l.b16 %v1653
          %v1723 = vunpack.c.h.b16 %v1653
          %v1724 = vunpack.c.l.b16 %v1654
          %v1725 = vunpack.c.h.b16 %v1654
          %v1726 = vunpack.c.l.b16 %v1655
          %v1727 = vunpack.c.h.b16 %v1655
          %v1728 = vunpack.c.l.b16 %v1656
          %v1729 = vunpack.c.h.b16 %v1656
          %v1730 = vunpack.c.l.b16 %v1657
          %v1731 = vunpack.c.h.b16 %v1657
          %v1732 = vunpack.c.l.b16 %v1658
          %v1733 = vunpack.c.h.b16 %v1658
          %v1734 = vunpack.c.l.b16 %v1659
          %v1735 = vunpack.c.h.b16 %v1659
          %v1736 = vunpack.c.l.b16 %v1660
          %v1737 = vunpack.c.h.b16 %v1660
          %v1738 = vunpack.c.l.b16 %v1661
          %v1739 = vunpack.c.h.b16 %v1661
          %v1740 = vunpack.c.l.b16 %v1662
          %v1741 = vunpack.c.h.b16 %v1662
          %v1742 = vunpack.c.l.b16 %v1663
          %v1743 = vunpack.c.h.b16 %v1663
          %v1744 = vunpack.c.l.b16 %v1664
          %v1745 = vunpack.c.h.b16 %v1664
          %v1746 = vunpack.c.l.b16 %v1665
          %v1747 = vunpack.c.h.b16 %v1665
          %v1748 = vunpack.c.l.b16 %v1666
          %v1749 = vunpack.c.h.b16 %v1666
          %v1750 = vunpack.c.l.b16 %v1667
          %v1751 = vunpack.c.h.b16 %v1667
          %v1752 = vunpack.c.l.b16 %v1668
          %v1753 = vunpack.c.h.b16 %v1668
          %v1754 = vunpack.c.l.b16 %v1669
          %v1755 = vunpack.c.h.b16 %v1669
          %v1756 = vunpack.c.l.b16 %v1670
          %v1757 = vunpack.c.h.b16 %v1670
          %v1758 = vunpack.c.l.b16 %v1671
          %v1759 = vunpack.c.h.b16 %v1671
          %v1760 = vunpack.c.l.b16 %v1672
          %v1761 = vunpack.c.h.b16 %v1672
          %v1762 = vunpack.c.l.b16 %v1673
          %v1763 = vunpack.c.h.b16 %v1673
          %v1764 = vunpack.c.l.b16 %v1674
          %v1765 = vunpack.c.h.b16 %v1674
          %v1766 = vunpack.c.l.b16 %v1675
          %v1767 = vunpack.c.h.b16 %v1675
          %v1768 = vunpack.c.l.b16 %v1676
          %v1769 = vunpack.c.h.b16 %v1676
          %v1770 = vunpack.c.l.b16 %v1677
          %v1771 = vunpack.c.h.b16 %v1677
          %v1772 = vunpack.c.l.b16 %v1678
          %v1773 = vunpack.c.h.b16 %v1678
          %v1774 = vunpack.c.l.b16 %v1679
          %v1775 = vunpack.c.h.b16 %v1679
          %v1776 = vpack.c.b16 %v1714, %v1712
          %v1777 = vpack.c.b16 %v1715, %v1713
          %v1778 = vpack.c.b16 %v1718, %v1716
          %v1779 = vpack.c.b16 %v1719, %v1717
          %v1780 = vpack.c.b16 %v1722, %v1720
          %v1781 = vpack.c.b16 %v1723, %v1721
          %v1782 = vpack.c.b16 %v1726, %v1724
          %v1783 = vpack.c.b16 %v1727, %v1725
          %v1784 = vpack.c.b16 %v1730, %v1728
          %v1785 = vpack.c.b16 %v1731, %v1729
          %v1786 = vpack.c.b16 %v1734, %v1732
          %v1787 = vpack.c.b16 %v1735, %v1733
          %v1788 = vpack.c.b16 %v1738, %v1736
          %v1789 = vpack.c.b16 %v1739, %v1737
          %v1790 = vpack.c.b16 %v1742, %v1740
          %v1791 = vpack.c.b16 %v1743, %v1741
          %v1792 = vpack.c.b16 %v1746, %v1744
          %v1793 = vpack.c.b16 %v1747, %v1745
          %v1794 = vpack.c.b16 %v1750, %v1748
          %v1795 = vpack.c.b16 %v1751, %v1749
          %v1796 = vpack.c.b16 %v1754, %v1752
          %v1797 = vpack.c.b16 %v1755, %v1753
          %v1798 = vpack.c.b16 %v1758, %v1756
          %v1799 = vpack.c.b16 %v1759, %v1757
          %v1800 = vpack.c.b16 %v1762, %v1760
          %v1801 = vpack.c.b16 %v1763, %v1761
          %v1802 = vpack.c.b16 %v1766, %v1764
          %v1803 = vpack.c.b16 %v1767, %v1765
          %v1804 = vpack.c.b16 %v1770, %v1768
          %v1805 = vpack.c.b16 %v1771, %v1769
          %v1806 = vpack.c.b16 %v1774, %v1772
          %v1807 = vpack.c.b16 %v1775, %v1773
          %1840 = vmatprep.subr.bf16.mxu0 %v1791
          %1841 = vmatpush1.bf16.msra.mxu0 %v1790
          %1842 = vmatprep.subr.bf16.mxu0 %v1789
          %1843 = vmatpush1.bf16.msra.mxu0 %v1788
          %1844 = vmatprep.subr.bf16.mxu0 %v1787
          %1845 = vmatpush1.bf16.msra.mxu0 %v1786
          %1846 = vmatprep.subr.bf16.mxu0 %v1785
          %1847 = vmatpush1.bf16.msra.mxu0 %v1784
          %1848 = vmatprep.subr.bf16.mxu0 %v1783
          %1849 = vmatpush1.bf16.msra.mxu0 %v1782
          %1850 = vmatprep.subr.bf16.mxu0 %v1781
          %1851 = vmatpush1.bf16.msra.mxu0 %v1780
          %1852 = vmatprep.subr.bf16.mxu0 %v1779
          %1853 = vmatpush1.bf16.msra.mxu0 %v1778
          %1854 = vmatprep.subr.bf16.mxu0 %v1777
          %1855 = vmatpush1.bf16.msra.mxu0 %v1776
          %1856 = vmatprep.subr.bf16.mxu0 %v1807
          %1857 = vmatpush2.bf16.msra.mxu0 %v1806
          %1858 = vmatprep.subr.bf16.mxu0 %v1805
          %1859 = vmatpush2.bf16.msra.mxu0 %v1804
          %1860 = vmatprep.subr.bf16.mxu0 %v1803
          %1861 = vmatpush2.bf16.msra.mxu0 %v1802
          %1862 = vmatprep.subr.bf16.mxu0 %v1801
          %1863 = vmatpush2.bf16.msra.mxu0 %v1800
          %1864 = vmatprep.subr.bf16.mxu0 %v1799
          %1865 = vmatpush2.bf16.msra.mxu0 %v1798
          %1866 = vmatprep.subr.bf16.mxu0 %v1797
          %1867 = vmatpush2.bf16.msra.mxu0 %v1796
          %1868 = vmatprep.subr.bf16.mxu0 %v1795
          %1869 = vmatpush2.bf16.msra.mxu0 %v1794
          %1870 = vmatprep.subr.bf16.mxu0 %v1793
          %1871 = vmatpush2.bf16.msra.mxu0 %v1792
          %1872 = vmatprep.mubr.bf16.mxu0 %v1633
          %1873 = vmatmul.mubr.bf16.gmra.mxu0 %v1632
          %v1874 = vpop.f32.mrf.mxu0
          %v1875 = vadd.f32 0.0, %v1874
          %v1876 = vpop.f32.mrf.mxu0
          %v1877 = vadd.f32 0.0, %v1876
          %v1878 = vpop.f32.mrf.mxu0
          %v1879 = vadd.f32 0.0, %v1878
          %v1880 = vpop.f32.mrf.mxu0
          %v1881 = vadd.f32 0.0, %v1880
          %1882 = vmatprep.mubr.bf16.mxu0 %v1635
          %1883 = vmatmul.mubr.bf16.gmra.mxu0 %v1634
          %v1884 = vpop.f32.mrf.mxu0
          %v1885 = vadd.f32 0.0, %v1884
          %v1886 = vpop.f32.mrf.mxu0
          %v1887 = vadd.f32 0.0, %v1886
          %v1888 = vpop.f32.mrf.mxu0
          %v1889 = vadd.f32 0.0, %v1888
          %v1890 = vpop.f32.mrf.mxu0
          %v1891 = vadd.f32 0.0, %v1890
          %1892 = vmatprep.mubr.bf16.mxu0 %v1637
          %1893 = vmatmul.mubr.bf16.gmra.mxu0 %v1636
          %v1894 = vpop.f32.mrf.mxu0
          %v1895 = vadd.f32 0.0, %v1894
          %v1896 = vpop.f32.mrf.mxu0
          %v1897 = vadd.f32 0.0, %v1896
          %v1898 = vpop.f32.mrf.mxu0
          %v1899 = vadd.f32 0.0, %v1898
          %v1900 = vpop.f32.mrf.mxu0
          %v1901 = vadd.f32 0.0, %v1900
          %1902 = vmatprep.mubr.bf16.mxu0 %v1639
          %1903 = vmatmul.mubr.bf16.gmra.mxu0 %v1638
          %v1904 = vpop.f32.mrf.mxu0
          %v1905 = vadd.f32 0.0, %v1904
          %v1906 = vpop.f32.mrf.mxu0
          %v1907 = vadd.f32 0.0, %v1906
          %v1908 = vpop.f32.mrf.mxu0
          %v1909 = vadd.f32 0.0, %v1908
          %v1910 = vpop.f32.mrf.mxu0
          %v1911 = vadd.f32 0.0, %v1910
          %1912 = vmatprep.mubr.bf16.mxu0 %v1641
          %1913 = vmatmul.mubr.bf16.gmra.mxu0 %v1640
          %v1914 = vpop.f32.mrf.mxu0
          %v1915 = vadd.f32 0.0, %v1914
          %v1916 = vpop.f32.mrf.mxu0
          %v1917 = vadd.f32 0.0, %v1916
          %v1918 = vpop.f32.mrf.mxu0
          %v1919 = vadd.f32 0.0, %v1918
          %v1920 = vpop.f32.mrf.mxu0
          %v1921 = vadd.f32 0.0, %v1920
          %1922 = vmatprep.mubr.bf16.mxu0 %v1643
          %1923 = vmatmul.mubr.bf16.gmra.mxu0 %v1642
          %v1924 = vpop.f32.mrf.mxu0
          %v1925 = vadd.f32 0.0, %v1924
          %v1926 = vpop.f32.mrf.mxu0
          %v1927 = vadd.f32 0.0, %v1926
          %v1928 = vpop.f32.mrf.mxu0
          %v1929 = vadd.f32 0.0, %v1928
          %v1930 = vpop.f32.mrf.mxu0
          %v1931 = vadd.f32 0.0, %v1930
          %1932 = vmatprep.mubr.bf16.mxu0 %v1645
          %1933 = vmatmul.mubr.bf16.gmra.mxu0 %v1644
          %v1934 = vpop.f32.mrf.mxu0
          %v1935 = vadd.f32 0.0, %v1934
          %v1936 = vpop.f32.mrf.mxu0
          %v1937 = vadd.f32 0.0, %v1936
          %v1938 = vpop.f32.mrf.mxu0
          %v1939 = vadd.f32 0.0, %v1938
          %v1940 = vpop.f32.mrf.mxu0
          %v1941 = vadd.f32 0.0, %v1940
          %1942 = vmatprep.mubr.bf16.mxu0 %v1647
          %1943 = vmatmul.mubr.bf16.gmra.mxu0 %v1646
          %v1944 = vpop.f32.mrf.mxu0
          %v1945 = vadd.f32 0.0, %v1944
          %v1946 = vpop.f32.mrf.mxu0
          %v1947 = vadd.f32 0.0, %v1946
          %v1948 = vpop.f32.mrf.mxu0
          %v1949 = vadd.f32 0.0, %v1948
          %v1950 = vpop.f32.mrf.mxu0
          %v1951 = vadd.f32 0.0, %v1950
          %1952 = vdwg.mxu0
          %v1953 = vadd.f32 %v1600, %v1875
          %v1954 = vadd.f32 %v1601, %v1877
          %v1955 = vadd.f32 %v1602, %v1879
          %v1956 = vadd.f32 %v1603, %v1881
          %v1957 = vadd.f32 %v1604, %v1885
          %v1958 = vadd.f32 %v1605, %v1887
          %v1959 = vadd.f32 %v1606, %v1889
          %v1960 = vadd.f32 %v1607, %v1891
          %v1961 = vadd.f32 %v1608, %v1895
          %v1962 = vadd.f32 %v1609, %v1897
          %v1963 = vadd.f32 %v1610, %v1899
          %v1964 = vadd.f32 %v1611, %v1901
          %v1965 = vadd.f32 %v1612, %v1905
          %v1966 = vadd.f32 %v1613, %v1907
          %v1967 = vadd.f32 %v1614, %v1909
          %v1968 = vadd.f32 %v1615, %v1911
          %v1969 = vadd.f32 %v1616, %v1915
          %v1970 = vadd.f32 %v1617, %v1917
          %v1971 = vadd.f32 %v1618, %v1919
          %v1972 = vadd.f32 %v1619, %v1921
          %v1973 = vadd.f32 %v1620, %v1925
          %v1974 = vadd.f32 %v1621, %v1927
          %v1975 = vadd.f32 %v1622, %v1929
          %v1976 = vadd.f32 %v1623, %v1931
          %v1977 = vadd.f32 %v1624, %v1935
          %v1978 = vadd.f32 %v1625, %v1937
          %v1979 = vadd.f32 %v1626, %v1939
          %v1980 = vadd.f32 %v1627, %v1941
          %v1981 = vadd.f32 %v1628, %v1945
          %v1982 = vadd.f32 %v1629, %v1947
          %v1983 = vadd.f32 %v1630, %v1949
          %v1984 = vadd.f32 %v1631, %v1951
          %1985 = vst [vmem:[#allocation2] sm:$0xff] %v1953
          %1986 = vst [vmem:[#allocation2 + $0x8] sm:$0xff] %v1954
          %1987 = vst [vmem:[#allocation2 + $0x10] sm:$0xff] %v1955
          %1988 = vst [vmem:[#allocation2 + $0x18] sm:$0xff] %v1956
          %1989 = vst [vmem:[#allocation2 + $0x20] sm:$0xff] %v1957
          %1990 = vst [vmem:[#allocation2 + $0x28] sm:$0xff] %v1958
          %1991 = vst [vmem:[#allocation2 + $0x30] sm:$0xff] %v1959
          %1992 = vst [vmem:[#allocation2 + $0x38] sm:$0xff] %v1960
          %1993 = vst [vmem:[#allocation2 + $0x40] sm:$0xff] %v1961
          %1994 = vst [vmem:[#allocation2 + $0x48] sm:$0xff] %v1962
          %1995 = vst [vmem:[#allocation2 + $0x50] sm:$0xff] %v1963
          %1996 = vst [vmem:[#allocation2 + $0x58] sm:$0xff] %v1964
          %1997 = vst [vmem:[#allocation2 + $0x60] sm:$0xff] %v1965
          %1998 = vst [vmem:[#allocation2 + $0x68] sm:$0xff] %v1966
          %1999 = vst [vmem:[#allocation2 + $0x70] sm:$0xff] %v1967
          %2000 = vst [vmem:[#allocation2 + $0x78] sm:$0xff] %v1968
          %2001 = vst [vmem:[#allocation2 + $0x80] sm:$0xff] %v1969
          %2002 = vst [vmem:[#allocation2 + $0x88] sm:$0xff] %v1970
          %2003 = vst [vmem:[#allocation2 + $0x90] sm:$0xff] %v1971
          %2004 = vst [vmem:[#allocation2 + $0x98] sm:$0xff] %v1972
          %2005 = vst [vmem:[#allocation2 + $0xa0] sm:$0xff] %v1973
          %2006 = vst [vmem:[#allocation2 + $0xa8] sm:$0xff] %v1974
          %2007 = vst [vmem:[#allocation2 + $0xb0] sm:$0xff] %v1975
          %2008 = vst [vmem:[#allocation2 + $0xb8] sm:$0xff] %v1976
          %2009 = vst [vmem:[#allocation2 + $0xc0] sm:$0xff] %v1977
          %2010 = vst [vmem:[#allocation2 + $0xc8] sm:$0xff] %v1978
          %2011 = vst [vmem:[#allocation2 + $0xd0] sm:$0xff] %v1979
          %2012 = vst [vmem:[#allocation2 + $0xd8] sm:$0xff] %v1980
          %2013 = vst [vmem:[#allocation2 + $0xe0] sm:$0xff] %v1981
          %2014 = vst [vmem:[#allocation2 + $0xe8] sm:$0xff] %v1982
          %2015 = vst [vmem:[#allocation2 + $0xf0] sm:$0xff] %v1983
          %2016 = vst [vmem:[#allocation2 + $0xf8] sm:$0xff] %v1984
        $region64: #{tpu_custom_call.1} parent=39 // pred_fallthru
          _
        %p2017 = scmp.eq.s32.totalorder %s41, 1
        // Predicated region
        $region65: #{tpu_custom_call.1} parent=39 // pred_check
          %p2018 = pneg %p2017
        $region66: #{tpu_custom_call.1} parent=39 // pred_check_branch
          %2020 = sbr.rel (%p2018) target = $region68
        $region67: #{tpu_custom_call.1} parent=39 // pred_region
          %v2021 = vld [vmem:[#allocation2] sm:$0xff]
          %v2022 = vld [vmem:[#allocation2 + $0x8] sm:$0xff]
          %v2023 = vld [vmem:[#allocation2 + $0x10] sm:$0xff]
          %v2024 = vld [vmem:[#allocation2 + $0x18] sm:$0xff]
          %v2025 = vld [vmem:[#allocation2 + $0x20] sm:$0xff]
          %v2026 = vld [vmem:[#allocation2 + $0x28] sm:$0xff]
          %v2027 = vld [vmem:[#allocation2 + $0x30] sm:$0xff]
          %v2028 = vld [vmem:[#allocation2 + $0x38] sm:$0xff]
          %v2029 = vld [vmem:[#allocation2 + $0x40] sm:$0xff]
          %v2030 = vld [vmem:[#allocation2 + $0x48] sm:$0xff]
          %v2031 = vld [vmem:[#allocation2 + $0x50] sm:$0xff]
          %v2032 = vld [vmem:[#allocation2 + $0x58] sm:$0xff]
          %v2033 = vld [vmem:[#allocation2 + $0x60] sm:$0xff]
          %v2034 = vld [vmem:[#allocation2 + $0x68] sm:$0xff]
          %v2035 = vld [vmem:[#allocation2 + $0x70] sm:$0xff]
          %v2036 = vld [vmem:[#allocation2 + $0x78] sm:$0xff]
          %v2037 = vld [vmem:[#allocation2 + $0x80] sm:$0xff]
          %v2038 = vld [vmem:[#allocation2 + $0x88] sm:$0xff]
          %v2039 = vld [vmem:[#allocation2 + $0x90] sm:$0xff]
          %v2040 = vld [vmem:[#allocation2 + $0x98] sm:$0xff]
          %v2041 = vld [vmem:[#allocation2 + $0xa0] sm:$0xff]
          %v2042 = vld [vmem:[#allocation2 + $0xa8] sm:$0xff]
          %v2043 = vld [vmem:[#allocation2 + $0xb0] sm:$0xff]
          %v2044 = vld [vmem:[#allocation2 + $0xb8] sm:$0xff]
          %v2045 = vld [vmem:[#allocation2 + $0xc0] sm:$0xff]
          %v2046 = vld [vmem:[#allocation2 + $0xc8] sm:$0xff]
          %v2047 = vld [vmem:[#allocation2 + $0xd0] sm:$0xff]
          %v2048 = vld [vmem:[#allocation2 + $0xd8] sm:$0xff]
          %v2049 = vld [vmem:[#allocation2 + $0xe0] sm:$0xff]
          %v2050 = vld [vmem:[#allocation2 + $0xe8] sm:$0xff]
          %v2051 = vld [vmem:[#allocation2 + $0xf0] sm:$0xff]
          %v2052 = vld [vmem:[#allocation2 + $0xf8] sm:$0xff]
          %v2053 = vpack.c.bf16 %v2023, %v2021
          %v2054 = vpack.c.bf16 %v2024, %v2022
          %v2055 = vpack.c.bf16 %v2027, %v2025
          %v2056 = vpack.c.bf16 %v2028, %v2026
          %v2057 = vpack.c.bf16 %v2031, %v2029
          %v2058 = vpack.c.bf16 %v2032, %v2030
          %v2059 = vpack.c.bf16 %v2035, %v2033
          %v2060 = vpack.c.bf16 %v2036, %v2034
          %v2061 = vpack.c.bf16 %v2039, %v2037
          %v2062 = vpack.c.bf16 %v2040, %v2038
          %v2063 = vpack.c.bf16 %v2043, %v2041
          %v2064 = vpack.c.bf16 %v2044, %v2042
          %v2065 = vpack.c.bf16 %v2047, %v2045
          %v2066 = vpack.c.bf16 %v2048, %v2046
          %v2067 = vpack.c.bf16 %v2051, %v2049
          %v2068 = vpack.c.bf16 %v2052, %v2050
          %v2085 = vunpack.c.l.b16 %v2053
          %v2086 = vunpack.c.l.b16 %v2054
          %v2087 = vunpack.c.h.b16 %v2053
          %v2088 = vunpack.c.h.b16 %v2054
          %v2089 = vunpack.c.l.b16 %v2055
          %v2090 = vunpack.c.l.b16 %v2056
          %v2091 = vunpack.c.h.b16 %v2055
          %v2092 = vunpack.c.h.b16 %v2056
          %v2093 = vunpack.c.l.b16 %v2057
          %v2094 = vunpack.c.l.b16 %v2058
          %v2095 = vunpack.c.h.b16 %v2057
          %v2096 = vunpack.c.h.b16 %v2058
          %v2097 = vunpack.c.l.b16 %v2059
          %v2098 = vunpack.c.l.b16 %v2060
          %v2099 = vunpack.c.h.b16 %v2059
          %v2100 = vunpack.c.h.b16 %v2060
          %v2101 = vunpack.c.l.b16 %v2061
          %v2102 = vunpack.c.l.b16 %v2062
          %v2103 = vunpack.c.h.b16 %v2061
          %v2104 = vunpack.c.h.b16 %v2062
          %v2105 = vunpack.c.l.b16 %v2063
          %v2106 = vunpack.c.l.b16 %v2064
          %v2107 = vunpack.c.h.b16 %v2063
          %v2108 = vunpack.c.h.b16 %v2064
          %v2109 = vunpack.c.l.b16 %v2065
          %v2110 = vunpack.c.l.b16 %v2066
          %v2111 = vunpack.c.h.b16 %v2065
          %v2112 = vunpack.c.h.b16 %v2066
          %v2113 = vunpack.c.l.b16 %v2067
          %v2114 = vunpack.c.l.b16 %v2068
          %v2115 = vunpack.c.h.b16 %v2067
          %v2116 = vunpack.c.h.b16 %v2068
          %v2117 = vpack.c.b16 %v2086, %v2085
          %v2118 = vpack.c.b16 %v2088, %v2087
          %v2119 = vpack.c.b16 %v2090, %v2089
          %v2120 = vpack.c.b16 %v2092, %v2091
          %v2121 = vpack.c.b16 %v2094, %v2093
          %v2122 = vpack.c.b16 %v2096, %v2095
          %v2123 = vpack.c.b16 %v2098, %v2097
          %v2124 = vpack.c.b16 %v2100, %v2099
          %v2125 = vpack.c.b16 %v2102, %v2101
          %v2126 = vpack.c.b16 %v2104, %v2103
          %v2127 = vpack.c.b16 %v2106, %v2105
          %v2128 = vpack.c.b16 %v2108, %v2107
          %v2129 = vpack.c.b16 %v2110, %v2109
          %v2130 = vpack.c.b16 %v2112, %v2111
          %v2131 = vpack.c.b16 %v2114, %v2113
          %v2132 = vpack.c.b16 %v2116, %v2115
          %2149 = vst [vmem:[%s445] sm:$0xff] %v2117
          %2150 = vst [vmem:[%s445 + $0x8] sm:$0xff] %v2118
          %2151 = vst [vmem:[%s445 + $0x10] sm:$0xff] %v2119
          %2152 = vst [vmem:[%s445 + $0x18] sm:$0xff] %v2120
          %2153 = vst [vmem:[%s445 + $0x20] sm:$0xff] %v2121
          %2154 = vst [vmem:[%s445 + $0x28] sm:$0xff] %v2122
          %2155 = vst [vmem:[%s445 + $0x30] sm:$0xff] %v2123
          %2156 = vst [vmem:[%s445 + $0x38] sm:$0xff] %v2124
          %2157 = vst [vmem:[%s445 + $0x40] sm:$0xff] %v2125
          %2158 = vst [vmem:[%s445 + $0x48] sm:$0xff] %v2126
          %2159 = vst [vmem:[%s445 + $0x50] sm:$0xff] %v2127
          %2160 = vst [vmem:[%s445 + $0x58] sm:$0xff] %v2128
          %2161 = vst [vmem:[%s445 + $0x60] sm:$0xff] %v2129
          %2162 = vst [vmem:[%s445 + $0x68] sm:$0xff] %v2130
          %2163 = vst [vmem:[%s445 + $0x70] sm:$0xff] %v2131
          %2164 = vst [vmem:[%s445 + $0x78] sm:$0xff] %v2132
        $region68: #{tpu_custom_call.1} parent=39 // pred_fallthru
          _
        %s2165 = sand.u32 %s216, 1
        %s2166 = scalar_lea.sflag [#allocation8], %s2165
        %s2167 = sand.u32 %s216, 1
        %s2168 = smul.addr %s2167, 128
        %s2169 = scalar_lea.vmem [#allocation14], %s2168
        // Predicated region
        $region69: #{tpu_custom_call.1} parent=39 // pred_check
          %p2170 = pneg %p226
        $region70: #{tpu_custom_call.1} parent=39 // pred_check_branch
          %2172 = sbr.rel (%p2170) target = $region72
        $region71: #{tpu_custom_call.1} parent=39 // pred_region
          %s2173 = smul.u32 16, %s40
          %s2175 = ssub.s32 2048, 2048
          %2176 = vsyncadd %s2166, %s2175
          %s2177 = smul.addr %s2173, 2
          %s2178 = smul.addr %s2177, 64
          %s2179 = scalar_lea.hbm %s7, %s2178
          %s2180 = sshll.u32 %s2169, 4
          %s2181 = int_to_ptr.vmem [resolvable:$true] %s2180
          %2186 = dma.vmem_to_hbm [thread:$0]  %s2181, 2048, %s2179, %s2166, 128, 128, 8
        $region72: #{tpu_custom_call.1} parent=39 // pred_fallthru
          _
      $region40: #{tpu_custom_call.1} parent=5 // pred_fallthru
        _
      %p2187 = scmp.le.s32.totalorder 2, %s31
      // Predicated region
      $region73: #{tpu_custom_call.1} parent=5 // pred_check
        %p2188 = pneg %p2187
      $region74: #{tpu_custom_call.1} parent=5 // pred_check_branch
        %2190 = sbr.rel (%p2188) target = $region76
      $region75: #{tpu_custom_call.1} parent=5 // pred_region
        %s2191 = ssub.s32 %s31, 2
        // Predicated region
        $region77: #{tpu_custom_call.1} parent=75 // pred_check
          %p2192 = pneg %p232
        $region78: #{tpu_custom_call.1} parent=75 // pred_check_branch
          %2194 = sbr.rel (%p2192) target = $region80
        $region79: #{tpu_custom_call.1} parent=75 // pred_region
          %s2195 = sand.u32 %s217, 1
          %s2196 = scalar_lea.sflag [#allocation8], %s2195
          %s2197 = sand.u32 %s217, 1
          %s2198 = smul.addr %s2197, 128
          %s2199 = scalar_lea.vmem [#allocation14], %s2198
          %2200 = dma.done %s2196, 2048
        $region80: #{tpu_custom_call.1} parent=75 // pred_fallthru
          _
      $region76: #{tpu_custom_call.1} parent=5 // pred_fallthru
        _
    $region6: #{tpu_custom_call.1} parent=1 // loop_footer
      %s35 = sadd.s32 1, %s31
    $region7: #{tpu_custom_call.1} parent=1 // loop_footer_branch
      %30 = sbr.rel target = $region3
    $region8: #{tpu_custom_call.1} parent=1 // loop_exit
      _
    %2201 = vsyncpa [#allocation7], 1
    %s2202 = scalar_lea.sflag [#allocation7], 1
    %2203 = vsyncpa %s2202, 1
    %2204 = vsyncpa [#allocation10], 1
    %s2205 = scalar_lea.sflag [#allocation10], 1
    %2206 = vsyncpa %s2205, 1
    %2207 = vsyncpa [#allocation13], 1
    %s2208 = scalar_lea.sflag [#allocation13], 1
    %2209 = vsyncpa %s2208, 1
    %2210 = vsyncpa [#allocation8], 1
    %s2211 = scalar_lea.sflag [#allocation8], 1
    %2212 = vsyncpa %s2211, 1

</llo_original>
